<compile_context>
chip_gen: v5e
topology: v5e:2x2
jax: 0.10.0
libtpu: 0.0.40
codegen_flags: <defaults>
</compile_context>

<pallas_src>
import jax
import jax.numpy as jnp
from jax.experimental import pallas as pl
from jax.experimental.pallas import tpu as pltpu


def _round_up(x, m):
    return (x + m - 1) // m * m


def _proj_pool_kernel(x_ref, w_ref, o_ref):
    """One patch tile: (tm, K) f32 -> bf16 -> MXU matmul -> f32 row-sum."""
    x = x_ref[...].astype(jnp.bfloat16)                     # VPU cast, hidden under MXU
    s = jnp.dot(x, w_ref[...], preferred_element_type=jnp.float32)  # (tm, D_out) f32
    o_ref[...] = jnp.sum(s, axis=0, keepdims=True)          # fused pool: partial patch-sum


def prism_slide_encoder_forward(batch, weight, bias, *, tm=512):
    """PRISM-style slide encoder forward.

    batch  : [B, N, D_in]  float32 patch features
    weight : [D_in, D_out] float32 frozen projection (torch Linear, transposed)
    bias   : [D_out]       float32
    returns: [B, D_out]    float32 slide-level image_embedding
    """
    B, N, D_in = batch.shape
    D_out = weight.shape[1]

    # Full-extent (lane-dense, 128-aligned) K and N blocks: W is VMEM-resident.
    K_p = _round_up(D_in, 128)
    Nout_p = _round_up(D_out, 128)

    # Patch-tile size: multiple of 8 sublanes, shrunk for small N and to keep
    # the resident-W + double-buffered-x footprint under the VMEM budget that
    # is safe on every generation (v7x: 64 MiB physical, 32 MiB scoped).
    tm = min(tm, _round_up(N, 8))
    tm = max(8, tm - tm % 8)
    vmem_budget = 26 * 1024 * 1024

    def _footprint(t):
        return (2 * t * K_p * 4          # x tile, f32, double-buffered
                + 2 * K_p * Nout_p * 2   # resident W, bf16 (2 buffers allocated)
                + 2 * Nout_p * 4)        # partial-sum output tile
    while tm > 8 and _footprint(tm) > vmem_budget:
        tm = max(8, tm // 2)

    N_p = _round_up(N, tm)
    P = N_p // tm

    # x stays f32; pad only if the shapes actually need it (zero rows/cols are
    # exact: they contribute nothing to the matmul or the patch sum).
    x = batch
    if N_p != N or K_p != D_in:
        x = jnp.pad(x, ((0, 0), (0, N_p - N), (0, K_p - D_in)))
    w = weight.astype(jnp.bfloat16)
    if K_p != D_in or Nout_p != D_out:
        w = jnp.pad(w, ((0, K_p - D_in), (0, Nout_p - D_out)))

    grid = (B, P)

    cost = pl.CostEstimate(
        flops=2 * B * N_p * K_p * Nout_p,
        transcendentals=0,
        bytes_accessed=int(B * N_p * K_p * 4       # x read (f32)
                           + K_p * Nout_p * 2      # W read once (bf16)
                           + B * P * Nout_p * 4),  # partial sums written
    )

    partials = pl.pallas_call(
        _proj_pool_kernel,
        out_shape=jax.ShapeDtypeStruct((B, P, Nout_p), jnp.float32),
        grid_spec=pltpu.PrefetchScalarGridSpec(
            num_scalar_prefetch=0,
            grid=grid,
            in_specs=[
                # x: one (tm, K_p) patch tile per step; slide dim squeezed.
                pl.BlockSpec((None, tm, K_p), lambda b, p: (b, p, 0)),
                # W: constant block index -> DMA'd once, stays VMEM-resident.
                pl.BlockSpec((K_p, Nout_p), lambda b, p: (0, 0)),
            ],
            # Tiny per-(slide, patch-tile) f32 partial sums; distinct block per
            # step so both grid axes stay "parallel" (v7x megacore sharding).
            out_specs=pl.BlockSpec((None, 1, Nout_p), lambda b, p: (b, p, 0)),
        ),
        compiler_params=pltpu.CompilerParams(
            dimension_semantics=("parallel", "parallel"),
            vmem_limit_bytes=32 * 1024 * 1024,
        ),
        cost_estimate=cost,
    )(x, w)

    # Wrapper glue on a few-KB tensor: sum partials, divide by the real patch
    # count, add the hoisted bias (mean(xW + b) == mean(xW) + b, exact).
    pooled = jnp.sum(partials, axis=1)[:, :D_out] / float(N)
    # TODO(synk): the pretrained Perceiver cross-attention aggregator of
    # paige-ai/Prism is not translatable here; approximated by projection +
    # mean pooling over patches.
    image_embedding = pooled + bias
    return image_embedding


if __name__ == "__main__":
    # Small PRISM-shaped demo (real PRISM: D_in=2560, embedding_dim=1280).
    # B=2 slides, N=256 patches/slide, D_in=640 patch features, D_out=320.
    B, N, D_in, D_out = 2, 256, 640, 320

    key = jax.random.PRNGKey(0)
    k_x, k_w, k_b = jax.random.split(key, 3)

    batch = jax.random.normal(k_x, (B, N, D_in), dtype=jnp.float32)
    weight = jax.random.normal(k_w, (D_in, D_out), dtype=jnp.float32) * 0.02
    bias = jax.random.normal(k_b, (D_out,), dtype=jnp.float32) * 0.02

    # Frozen parameters (freeze=True): no gradients are ever taken here.
    weight = jax.lax.stop_gradient(weight)
    bias = jax.lax.stop_gradient(bias)

    z = prism_slide_encoder_forward(batch, weight, bias)
    z = jax.block_until_ready(z)
    assert z.shape == (B, D_out)

    # Reference: identical bf16-operand / f32-accumulate math in plain JAX.
    xb = batch.reshape(B * N, D_in).astype(jnp.bfloat16)
    wb = weight.astype(jnp.bfloat16)
    ref_pp = jnp.dot(xb, wb, preferred_element_type=jnp.float32)
    ref = jnp.mean(ref_pp.reshape(B, N, D_out), axis=1) + bias

    assert jnp.allclose(z, ref, atol=1e-2, rtol=1e-2), \
        float(jnp.max(jnp.abs(z - ref)))

    print("KERNEL_OK")
</pallas_src>

<mosaic_0001>
module attributes {stable_mosaic.version = 11 : i64} {
  func.func @_proj_pool_kernel(%arg0: i32, %arg1: i32, %arg2: memref<1x256x640xf32, #tpu.memory_space<vmem>>, %arg3: memref<640x384xbf16, #tpu.memory_space<vmem>>, %arg4: memref<1x1x384xf32, #tpu.memory_space<vmem>>) attributes {dimension_semantics = [#tpu.dimension_semantics<parallel>, #tpu.dimension_semantics<parallel>], iteration_bounds = array<i64: 2, 1>, scalar_prefetch = 0 : i64, scratch_operands = 0 : i64, tpu.core_type = #tpu.core_type<tc>, window_params = [{transform_indices = @transform_0, window_bounds = array<i64: 1, 256, 640>}, {pipeline_mode = #tpu.pipeline_mode<synchronous>, transform_indices = @transform_1, window_bounds = array<i64: 640, 384>}, {transform_indices = @transform_2, window_bounds = array<i64: 1, 1, 384>}]} {
    %c0 = arith.constant 0 : index
    %c0_0 = arith.constant 0 : index
    %c0_1 = arith.constant 0 : index
    %0 = vector.load %arg2[%c0, %c0_0, %c0_1] : memref<1x256x640xf32, #tpu.memory_space<vmem>>, vector<1x256x640xf32>
    %1 = vector.shape_cast %0 : vector<1x256x640xf32> to vector<256x640xf32>
    %2 = arith.truncf %1 : vector<256x640xf32> to vector<256x640xbf16>
    %c0_2 = arith.constant 0 : index
    %c0_3 = arith.constant 0 : index
    %3 = vector.load %arg3[%c0_2, %c0_3] : memref<640x384xbf16, #tpu.memory_space<vmem>>, vector<640x384xbf16>
    %cst = arith.constant dense<0.000000e+00> : vector<256x384xf32>
    %4 = tpu.matmul %2, %3, %cst {dimension_numbers = #tpu.dot_dimension_numbers<[1], [0], [0], [1], [0, 0, 1, 1], [], []>} : vector<256x640xbf16>, vector<640x384xbf16>, vector<256x384xf32> -> vector<256x384xf32>
    %cst_4 = arith.constant dense<0.000000e+00> : vector<384xf32>
    %5 = vector.multi_reduction <add>, %4, %cst_4 [0] : vector<256x384xf32> to vector<384xf32>
    %6 = vector.shape_cast %5 : vector<384xf32> to vector<1x384xf32>
    %c0_5 = arith.constant 0 : index
    %c0_6 = arith.constant 0 : index
    %c0_7 = arith.constant 0 : index
    %7 = vector.load %arg4[%c0_5, %c0_6, %c0_7] : memref<1x1x384xf32, #tpu.memory_space<vmem>>, vector<1x1x384xf32>
    %8 = vector.shape_cast %7 : vector<1x1x384xf32> to vector<1x384xf32>
    %9 = vector.shape_cast %6 : vector<1x384xf32> to vector<1x1x384xf32>
    tpu.vector_store %arg4[%c0_5, %c0_6, %c0_7], %9 {strides = array<i32>} : memref<1x1x384xf32, #tpu.memory_space<vmem>>, vector<1x1x384xf32>,
    return
  }
  func.func @transform_0(%arg0: i32, %arg1: i32) -> (i32, i32, i32) {
    %c0_i32 = arith.constant 0 : i32
    %c0_i32_0 = arith.constant 0 : i32
    return %arg0, %arg1, %c0_i32 : i32, i32, i32
  }
  func.func @transform_1(%arg0: i32, %arg1: i32) -> (i32, i32) {
    %c0_i32 = arith.constant 0 : i32
    %c0_i32_0 = arith.constant 0 : i32
    %c0_i32_1 = arith.constant 0 : i32
    return %c0_i32, %c0_i32_0 : i32, i32
  }
  func.func @transform_2(%arg0: i32, %arg1: i32) -> (i32, i32, i32) {
    %c0_i32 = arith.constant 0 : i32
    %c0_i32_0 = arith.constant 0 : i32
    return %arg0, %arg1, %c0_i32 : i32, i32, i32
  }
}

</mosaic_0001>

<llo_original>
// kernel: tpu_custom_call.1
$region0: #{tpu_custom_call.1}
  #allocation0 [shape = 'u32[]', space=smem, size = 0x4, offset = 0x4, fixed_abs, tag = 'smem constant byte address 0x4 - core index']
  #allocation1 [shape = 'u32[72,128]{1,0:T(1,128)}', space=vmem, size = 0x9000, scoped, tag = 'internal scratch']
  %s0 = inlined_call_operand.hbm [shape: f32[2,256,640], index: 0, kind: input, shape index: {}]
  %s1 = inlined_call_operand.hbm [shape: bf16[640,384], index: 1, kind: input, shape index: {}]
  %s2 = inlined_call_operand.hbm [shape: f32[2,1,384], index: 2, kind: output, shape index: {}]
  %s3 = sld [smem:[#allocation0]]
  $region49: #{tpu_custom_call.1} parent=0
    _
  %s5 = ssub.s32 1, %s3
  %s6 = scalar_select 0, %s5, %s3
  $region1: #{tpu_custom_call.1} parent=0
    #allocation2 [shape = 'u8[1310720]{0}', space=vmem, size = 0x140000, scoped, tag = 'input window, operand 0']
    #allocation3 [shape = 's32[2]{0}', space=sflag, size = 0x8, scoped, tag = 'scoped memory for tpu_custom_call.1']
    #allocation4 [shape = 's32[2]{0}', space=sflag, size = 0x8, scoped, tag = 'scoped memory for tpu_custom_call.1']
    #allocation5 [shape = 'u8[491520]{0}', space=vmem, size = 0x78000, scoped, tag = 'input window, operand 1, single buffered']
    #allocation6 [shape = 's32[1]{0}', space=sflag, size = 0x4, scoped, tag = 'scoped memory for tpu_custom_call.1']
    #allocation7 [shape = 'u8[3072]{0}', space=vmem, size = 0xc00, scoped, tag = 'output window, operand 0']
    %7 = vsyncpa [#allocation3], 0
    %s8 = scalar_lea.sflag [#allocation3], 1
    %9 = vsyncpa %s8, 0
    %10 = vsyncpa [#allocation6], 0
    %11 = vsyncpa [#allocation4], 0
    %s12 = scalar_lea.sflag [#allocation4], 1
    %13 = vsyncpa %s12, 0
    loop: start=0, step=1, limit=4
    $region2: #{tpu_custom_call.1} parent=1 // loop_pre_header
      _
    $region3: #{tpu_custom_call.1} parent=1 // loop_header
      %s15 = sphi 0, %s19
      %p16 = scmp.ge.s32.totalorder %s15, 4
      %s22 = sphi 0, %s34
      %s23 = sphi 0, %s30
      %s24 = sphi 0, %s22
      %s25 = sphi 0, %s23
      %s26 = sphi 0, %s24
      %s27 = sphi 0, %s25
      %s39 = sphi 0, %s41
      %s42 = sphi 0, %s39
      %s43 = sphi 0, %s42
      %s59 = sphi 0, %s43
      %s63 = sphi 0, %s63
      %s65 = sphi 0, %s63
      %s66 = sphi 0, %s65
      %s80 = sphi 0, %s66
      %s88 = sphi 0, %s90
      %s91 = sphi 0, %s88
      %s92 = sphi 0, %s91
      %s108 = sphi 0, %s92
    $region4: #{tpu_custom_call.1} parent=1 // loop_header_branch
      %18 = sbr.rel (%p16) target = $region8
    $region5: #{tpu_custom_call.1} parent=1 // loop_body
      %s20 = ssub.s32 %s15, 1
      %s21 = ssub.s32 %s15, 2
      %s28 = sadd.s32 1, %s23
      %p29 = scmp.ge.s32.totalorder %s28, 1
      %s30 = scalar_select %p29, 0, %s28
      %s31 = sadd.s32 1, %s22
      %s32 = scalar_select %p29, %s31, %s22
      %p33 = scmp.ge.s32.totalorder %s32, 2
      %s34 = scalar_select %p33, 0, %s32
      %s35 = ssub.s32 %s22, %s34
      %s36 = ssub.s32 %s23, %s30
      %s37 = sor.u32 %s35, %s36
      %p38 = scmp.eq.s32.totalorder %s37, 0
      %s40 = sadd.s32 %s39, 1
      %s41 = scalar_select %p38, %s39, %s40
      %p44 = pneg %p38
      %p45 = scmp.eq.s32.totalorder %s15, 1
      %p46 = por %p44, %p45
      %p47 = scmp.ne.s32.totalorder %s39, %s42
      %p48 = scmp.eq.s32.totalorder %s15, 0
      %p49 = por %p47, %p48
      %p50 = scmp.ne.s32.totalorder %s39, %s42
      %p51 = scmp.eq.s32.totalorder %s20, 1
      %p52 = por %p50, %p51
      %p53 = scmp.ne.s32.totalorder %s42, %s43
      %p54 = scmp.eq.s32.totalorder %s20, 0
      %p55 = por %p53, %p54
      %p56 = scmp.ne.s32.totalorder %s42, %s43
      %p57 = scmp.eq.s32.totalorder %s21, 1
      %p58 = por %p56, %p57
      %p60 = scmp.ne.s32.totalorder %s43, %s59
      %p61 = scmp.eq.s32.totalorder %s21, 0
      %p62 = por %p60, %p61
      %s64 = sadd.s32 %s63, 1
      %p67 = scmp.eq.s32.totalorder %s15, 1
      %p68 = scmp.ne.s32.totalorder %s63, %s65
      %p69 = scmp.eq.s32.totalorder %s15, 0
      %p70 = por %p68, %p69
      %p71 = scmp.ne.s32.totalorder %s63, %s65
      %p72 = scmp.eq.s32.totalorder %s20, 1
      %p73 = por %p71, %p72
      %p74 = scmp.ne.s32.totalorder %s65, %s66
      %p75 = scmp.eq.s32.totalorder %s20, 0
      %p76 = por %p74, %p75
      %p77 = scmp.ne.s32.totalorder %s65, %s66
      %p78 = scmp.eq.s32.totalorder %s21, 1
      %p79 = por %p77, %p78
      %p81 = scmp.ne.s32.totalorder %s66, %s80
      %p82 = scmp.eq.s32.totalorder %s21, 0
      %p83 = por %p81, %p82
      %s84 = ssub.s32 %s22, %s34
      %s85 = ssub.s32 %s23, %s30
      %s86 = sor.u32 %s84, %s85
      %p87 = scmp.eq.s32.totalorder %s86, 0
      %s89 = sadd.s32 %s88, 1
      %s90 = scalar_select %p87, %s88, %s89
      %p93 = pneg %p87
      %p94 = scmp.eq.s32.totalorder %s15, 1
      %p95 = por %p93, %p94
      %p96 = scmp.ne.s32.totalorder %s88, %s91
      %p97 = scmp.eq.s32.totalorder %s15, 0
      %p98 = por %p96, %p97
      %p99 = scmp.ne.s32.totalorder %s88, %s91
      %p100 = scmp.eq.s32.totalorder %s20, 1
      %p101 = por %p99, %p100
      %p102 = scmp.ne.s32.totalorder %s91, %s92
      %p103 = scmp.eq.s32.totalorder %s20, 0
      %p104 = por %p102, %p103
      %p105 = scmp.ne.s32.totalorder %s91, %s92
      %p106 = scmp.eq.s32.totalorder %s21, 1
      %p107 = por %p105, %p106
      %p109 = scmp.ne.s32.totalorder %s92, %s108
      %p110 = scmp.eq.s32.totalorder %s21, 0
      %p111 = por %p109, %p110
      %p112 = scmp.le.s32.totalorder 1, %s15
      %p113 = scmp.lt.s32.totalorder %s15, 3
      %p114 = pnand %p112, %p113
      %p115 = pneg %p114
      // Predicated region
      $region9: #{tpu_custom_call.1} parent=5 // pred_check
        _
      $region10: #{tpu_custom_call.1} parent=5 // pred_check_branch
        %117 = sbr.rel (%p114) target = $region12
      $region11: #{tpu_custom_call.1} parent=5 // pred_region
        %s118 = ssub.s32 %s15, 1
        // Predicated region
        $region13: #{tpu_custom_call.1} parent=11 // pred_check
          %p119 = pneg %p76
        $region14: #{tpu_custom_call.1} parent=11 // pred_check_branch
          %121 = sbr.rel (%p119) target = $region16
        $region15: #{tpu_custom_call.1} parent=11 // pred_region
          %123 = vsyncadd [#allocation6], 0
          %s124 = sshll.u32 %s1, 4
          %s125 = int_to_ptr.hbm [resolvable:$true] %s124
          %s126 = sshll.u32 [#allocation5], 4
          %s127 = int_to_ptr.vmem [resolvable:$true] %s126
          %132 = dma.hbm_to_vmem [thread:$0]  %s125, 15360, %s127, [#allocation6], 192, 192, 12
        $region16: #{tpu_custom_call.1} parent=11 // pred_fallthru
          _
      $region12: #{tpu_custom_call.1} parent=5 // pred_fallthru
        _
      %p133 = scmp.lt.s32.totalorder %s15, 2
      // Predicated region
      $region17: #{tpu_custom_call.1} parent=5 // pred_check
        %p134 = pneg %p133
      $region18: #{tpu_custom_call.1} parent=5 // pred_check_branch
        %136 = sbr.rel (%p134) target = $region20
      $region19: #{tpu_custom_call.1} parent=5 // pred_region
        // Predicated region
        $region21: #{tpu_custom_call.1} parent=19 // pred_check
          %p137 = pneg %p49
        $region22: #{tpu_custom_call.1} parent=19 // pred_check_branch
          %139 = sbr.rel (%p137) target = $region24
        $region23: #{tpu_custom_call.1} parent=19 // pred_region
          %s140 = sand.u32 %s39, 1
          %s141 = scalar_lea.sflag [#allocation3], %s140
          %s142 = sand.u32 %s39, 1
          %s143 = smul.addr %s142, 1280
          %s144 = scalar_lea.vmem [#allocation2], %s143
          %s145 = smul.u32 32, %s23
          %147 = vsyncadd %s141, 0
          %s148 = smul.addr %s145, 5
          %s149 = smul.addr %s22, 160
          %s150 = sadd.s32 %s148, %s149
          %s151 = smul.addr %s150, 8
          %s152 = scalar_lea.hbm %s0, %s151
          %s153 = sshll.u32 %s152, 4
          %s154 = int_to_ptr.hbm [resolvable:$true] %s153
          %s155 = sshll.u32 %s144, 4
          %s156 = int_to_ptr.vmem [resolvable:$true] %s155
          %161 = dma.hbm_to_vmem [thread:$0]  %s154, 20480, %s156, %s141, 640, 640, 40
        $region24: #{tpu_custom_call.1} parent=19 // pred_fallthru
          _
      $region20: #{tpu_custom_call.1} parent=5 // pred_fallthru
        _
      %p162 = scmp.le.s32.totalorder 1, %s15
      %p163 = scmp.lt.s32.totalorder %s15, 3
      %p164 = pnand %p162, %p163
      %p165 = pneg %p164
      // Predicated region
      $region25: #{tpu_custom_call.1} parent=5 // pred_check
        _
      $region26: #{tpu_custom_call.1} parent=5 // pred_check_branch
        %167 = sbr.rel (%p164) target = $region28
      $region27: #{tpu_custom_call.1} parent=5 // pred_region
        %s168 = ssub.s32 %s15, 1
        %s169 = sand.u32 %s42, 1
        %s170 = scalar_lea.sflag [#allocation3], %s169
        %s171 = sand.u32 %s42, 1
        %s172 = smul.addr %s171, 1280
        %s173 = scalar_lea.vmem [#allocation2], %s172
        // Predicated region
        $region29: #{tpu_custom_call.1} parent=27 // pred_check
          %p174 = pneg %p55
        $region30: #{tpu_custom_call.1} parent=27 // pred_check_branch
          %176 = sbr.rel (%p174) target = $region32
        $region31: #{tpu_custom_call.1} parent=27 // pred_region
          %178 = dma.done %s170, 20480
        $region32: #{tpu_custom_call.1} parent=27 // pred_fallthru
          _
        // Predicated region
        $region33: #{tpu_custom_call.1} parent=27 // pred_check
          %p179 = pneg %p76
        $region34: #{tpu_custom_call.1} parent=27 // pred_check_branch
          %181 = sbr.rel (%p179) target = $region36
        $region35: #{tpu_custom_call.1} parent=27 // pred_region
          %183 = dma.done [#allocation6], 15360
        $region36: #{tpu_custom_call.1} parent=27 // pred_fallthru
          _
        %s184 = sand.u32 %s42, 1
        %s185 = scalar_lea.sflag [#allocation3], %s184
        %s186 = sand.u32 %s42, 1
        %s187 = smul.addr %s186, 1280
        %s188 = scalar_lea.vmem [#allocation2], %s187
        %p189 = pneg %p55
        %p190 = pneg %p52
        %p191 = pneg %p76
        %p192 = pneg %p73
        %p193 = pneg %p104
        %p194 = pneg %p101
        %s195 = sand.u32 %s91, 1
        %s196 = scalar_lea.sflag [#allocation4], %s195
        %s197 = sand.u32 %s91, 1
        %s198 = smul.addr %s197, 3
        %s199 = scalar_lea.vmem [#allocation7], %s198
        %s200 = smul.u32 32, %s25
        %v201 = vld [vmem:[%s173] sm:$0xff]
        %v202 = vld [vmem:[%s173 + $0x8] sm:$0xff]
        %v203 = vld [vmem:[%s173 + $0x10] sm:$0xff]
        %v204 = vld [vmem:[%s173 + $0x18] sm:$0xff]
        %v205 = vld [vmem:[%s173 + $0x20] sm:$0xff]
        %v206 = vld [vmem:[%s173 + $0x28] sm:$0xff]
        %v207 = vld [vmem:[%s173 + $0x30] sm:$0xff]
        %v208 = vld [vmem:[%s173 + $0x38] sm:$0xff]
        %v209 = vld [vmem:[%s173 + $0x40] sm:$0xff]
        %v210 = vld [vmem:[%s173 + $0x48] sm:$0xff]
        %v211 = vld [vmem:[%s173 + $0x50] sm:$0xff]
        %v212 = vld [vmem:[%s173 + $0x58] sm:$0xff]
        %v213 = vld [vmem:[%s173 + $0x60] sm:$0xff]
        %v214 = vld [vmem:[%s173 + $0x68] sm:$0xff]
        %v215 = vld [vmem:[%s173 + $0x70] sm:$0xff]
        %v216 = vld [vmem:[%s173 + $0x78] sm:$0xff]
        %v217 = vld [vmem:[%s173 + $0x80] sm:$0xff]
        %v218 = vld [vmem:[%s173 + $0x88] sm:$0xff]
        %v219 = vld [vmem:[%s173 + $0x90] sm:$0xff]
        %v220 = vld [vmem:[%s173 + $0x98] sm:$0xff]
        %v221 = vld [vmem:[%s173 + $0xa0] sm:$0xff]
        %v222 = vld [vmem:[%s173 + $0xa8] sm:$0xff]
        %v223 = vld [vmem:[%s173 + $0xb0] sm:$0xff]
        %v224 = vld [vmem:[%s173 + $0xb8] sm:$0xff]
        %v225 = vld [vmem:[%s173 + $0xc0] sm:$0xff]
        %v226 = vld [vmem:[%s173 + $0xc8] sm:$0xff]
        %v227 = vld [vmem:[%s173 + $0xd0] sm:$0xff]
        %v228 = vld [vmem:[%s173 + $0xd8] sm:$0xff]
        %v229 = vld [vmem:[%s173 + $0xe0] sm:$0xff]
        %v230 = vld [vmem:[%s173 + $0xe8] sm:$0xff]
        %v231 = vld [vmem:[%s173 + $0xf0] sm:$0xff]
        %v232 = vld [vmem:[%s173 + $0xf8] sm:$0xff]
        %v233 = vld [vmem:[%s173 + $0x100] sm:$0xff]
        %v234 = vld [vmem:[%s173 + $0x108] sm:$0xff]
        %v235 = vld [vmem:[%s173 + $0x110] sm:$0xff]
        %v236 = vld [vmem:[%s173 + $0x118] sm:$0xff]
        %v237 = vld [vmem:[%s173 + $0x120] sm:$0xff]
        %v238 = vld [vmem:[%s173 + $0x128] sm:$0xff]
        %v239 = vld [vmem:[%s173 + $0x130] sm:$0xff]
        %v240 = vld [vmem:[%s173 + $0x138] sm:$0xff]
        %v241 = vld [vmem:[%s173 + $0x140] sm:$0xff]
        %v242 = vld [vmem:[%s173 + $0x148] sm:$0xff]
        %v243 = vld [vmem:[%s173 + $0x150] sm:$0xff]
        %v244 = vld [vmem:[%s173 + $0x158] sm:$0xff]
        %v245 = vld [vmem:[%s173 + $0x160] sm:$0xff]
        %v246 = vld [vmem:[%s173 + $0x168] sm:$0xff]
        %v247 = vld [vmem:[%s173 + $0x170] sm:$0xff]
        %v248 = vld [vmem:[%s173 + $0x178] sm:$0xff]
        %v249 = vld [vmem:[%s173 + $0x180] sm:$0xff]
        %v250 = vld [vmem:[%s173 + $0x188] sm:$0xff]
        %v251 = vld [vmem:[%s173 + $0x190] sm:$0xff]
        %v252 = vld [vmem:[%s173 + $0x198] sm:$0xff]
        %v253 = vld [vmem:[%s173 + $0x1a0] sm:$0xff]
        %v254 = vld [vmem:[%s173 + $0x1a8] sm:$0xff]
        %v255 = vld [vmem:[%s173 + $0x1b0] sm:$0xff]
        %v256 = vld [vmem:[%s173 + $0x1b8] sm:$0xff]
        %v257 = vld [vmem:[%s173 + $0x1c0] sm:$0xff]
        %v258 = vld [vmem:[%s173 + $0x1c8] sm:$0xff]
        %v259 = vld [vmem:[%s173 + $0x1d0] sm:$0xff]
        %v260 = vld [vmem:[%s173 + $0x1d8] sm:$0xff]
        %v261 = vld [vmem:[%s173 + $0x1e0] sm:$0xff]
        %v262 = vld [vmem:[%s173 + $0x1e8] sm:$0xff]
        %v263 = vld [vmem:[%s173 + $0x1f0] sm:$0xff]
        %v264 = vld [vmem:[%s173 + $0x1f8] sm:$0xff]
        %v265 = vld [vmem:[%s173 + $0x200] sm:$0xff]
        %v266 = vld [vmem:[%s173 + $0x208] sm:$0xff]
        %v267 = vld [vmem:[%s173 + $0x210] sm:$0xff]
        %v268 = vld [vmem:[%s173 + $0x218] sm:$0xff]
        %v269 = vld [vmem:[%s173 + $0x220] sm:$0xff]
        %v270 = vld [vmem:[%s173 + $0x228] sm:$0xff]
        %v271 = vld [vmem:[%s173 + $0x230] sm:$0xff]
        %v272 = vld [vmem:[%s173 + $0x238] sm:$0xff]
        %v273 = vld [vmem:[%s173 + $0x240] sm:$0xff]
        %v274 = vld [vmem:[%s173 + $0x248] sm:$0xff]
        %v275 = vld [vmem:[%s173 + $0x250] sm:$0xff]
        %v276 = vld [vmem:[%s173 + $0x258] sm:$0xff]
        %v277 = vld [vmem:[%s173 + $0x260] sm:$0xff]
        %v278 = vld [vmem:[%s173 + $0x268] sm:$0xff]
        %v279 = vld [vmem:[%s173 + $0x270] sm:$0xff]
        %v280 = vld [vmem:[%s173 + $0x278] sm:$0xff]
        %v281 = vld [vmem:[%s173 + $0x280] sm:$0xff]
        %v282 = vld [vmem:[%s173 + $0x288] sm:$0xff]
        %v283 = vld [vmem:[%s173 + $0x290] sm:$0xff]
        %v284 = vld [vmem:[%s173 + $0x298] sm:$0xff]
        %v285 = vld [vmem:[%s173 + $0x2a0] sm:$0xff]
        %v286 = vld [vmem:[%s173 + $0x2a8] sm:$0xff]
        %v287 = vld [vmem:[%s173 + $0x2b0] sm:$0xff]
        %v288 = vld [vmem:[%s173 + $0x2b8] sm:$0xff]
        %v289 = vld [vmem:[%s173 + $0x2c0] sm:$0xff]
        %v290 = vld [vmem:[%s173 + $0x2c8] sm:$0xff]
        %v291 = vld [vmem:[%s173 + $0x2d0] sm:$0xff]
        %v292 = vld [vmem:[%s173 + $0x2d8] sm:$0xff]
        %v293 = vld [vmem:[%s173 + $0x2e0] sm:$0xff]
        %v294 = vld [vmem:[%s173 + $0x2e8] sm:$0xff]
        %v295 = vld [vmem:[%s173 + $0x2f0] sm:$0xff]
        %v296 = vld [vmem:[%s173 + $0x2f8] sm:$0xff]
        %v297 = vld [vmem:[%s173 + $0x300] sm:$0xff]
        %v298 = vld [vmem:[%s173 + $0x308] sm:$0xff]
        %v299 = vld [vmem:[%s173 + $0x310] sm:$0xff]
        %v300 = vld [vmem:[%s173 + $0x318] sm:$0xff]
        %v301 = vld [vmem:[%s173 + $0x320] sm:$0xff]
        %v302 = vld [vmem:[%s173 + $0x328] sm:$0xff]
        %v303 = vld [vmem:[%s173 + $0x330] sm:$0xff]
        %v304 = vld [vmem:[%s173 + $0x338] sm:$0xff]
        %v305 = vld [vmem:[%s173 + $0x340] sm:$0xff]
        %v306 = vld [vmem:[%s173 + $0x348] sm:$0xff]
        %v307 = vld [vmem:[%s173 + $0x350] sm:$0xff]
        %v308 = vld [vmem:[%s173 + $0x358] sm:$0xff]
        %v309 = vld [vmem:[%s173 + $0x360] sm:$0xff]
        %v310 = vld [vmem:[%s173 + $0x368] sm:$0xff]
        %v311 = vld [vmem:[%s173 + $0x370] sm:$0xff]
        %v312 = vld [vmem:[%s173 + $0x378] sm:$0xff]
        %v313 = vld [vmem:[%s173 + $0x380] sm:$0xff]
        %v314 = vld [vmem:[%s173 + $0x388] sm:$0xff]
        %v315 = vld [vmem:[%s173 + $0x390] sm:$0xff]
        %v316 = vld [vmem:[%s173 + $0x398] sm:$0xff]
        %v317 = vld [vmem:[%s173 + $0x3a0] sm:$0xff]
        %v318 = vld [vmem:[%s173 + $0x3a8] sm:$0xff]
        %v319 = vld [vmem:[%s173 + $0x3b0] sm:$0xff]
        %v320 = vld [vmem:[%s173 + $0x3b8] sm:$0xff]
        %v321 = vld [vmem:[%s173 + $0x3c0] sm:$0xff]
        %v322 = vld [vmem:[%s173 + $0x3c8] sm:$0xff]
        %v323 = vld [vmem:[%s173 + $0x3d0] sm:$0xff]
        %v324 = vld [vmem:[%s173 + $0x3d8] sm:$0xff]
        %v325 = vld [vmem:[%s173 + $0x3e0] sm:$0xff]
        %v326 = vld [vmem:[%s173 + $0x3e8] sm:$0xff]
        %v327 = vld [vmem:[%s173 + $0x3f0] sm:$0xff]
        %v328 = vld [vmem:[%s173 + $0x3f8] sm:$0xff]
        %v329 = vld [vmem:[%s173 + $0x400] sm:$0xff]
        %v330 = vld [vmem:[%s173 + $0x408] sm:$0xff]
        %v331 = vld [vmem:[%s173 + $0x410] sm:$0xff]
        %v332 = vld [vmem:[%s173 + $0x418] sm:$0xff]
        %v333 = vld [vmem:[%s173 + $0x420] sm:$0xff]
        %v334 = vld [vmem:[%s173 + $0x428] sm:$0xff]
        %v335 = vld [vmem:[%s173 + $0x430] sm:$0xff]
        %v336 = vld [vmem:[%s173 + $0x438] sm:$0xff]
        %v337 = vld [vmem:[%s173 + $0x440] sm:$0xff]
        %v338 = vld [vmem:[%s173 + $0x448] sm:$0xff]
        %v339 = vld [vmem:[%s173 + $0x450] sm:$0xff]
        %v340 = vld [vmem:[%s173 + $0x458] sm:$0xff]
        %v341 = vld [vmem:[%s173 + $0x460] sm:$0xff]
        %v342 = vld [vmem:[%s173 + $0x468] sm:$0xff]
        %v343 = vld [vmem:[%s173 + $0x470] sm:$0xff]
        %v344 = vld [vmem:[%s173 + $0x478] sm:$0xff]
        %v345 = vld [vmem:[%s173 + $0x480] sm:$0xff]
        %v346 = vld [vmem:[%s173 + $0x488] sm:$0xff]
        %v347 = vld [vmem:[%s173 + $0x490] sm:$0xff]
        %v348 = vld [vmem:[%s173 + $0x498] sm:$0xff]
        %v349 = vld [vmem:[%s173 + $0x4a0] sm:$0xff]
        %v350 = vld [vmem:[%s173 + $0x4a8] sm:$0xff]
        %v351 = vld [vmem:[%s173 + $0x4b0] sm:$0xff]
        %v352 = vld [vmem:[%s173 + $0x4b8] sm:$0xff]
        %v353 = vld [vmem:[%s173 + $0x4c0] sm:$0xff]
        %v354 = vld [vmem:[%s173 + $0x4c8] sm:$0xff]
        %v355 = vld [vmem:[%s173 + $0x4d0] sm:$0xff]
        %v356 = vld [vmem:[%s173 + $0x4d8] sm:$0xff]
        %v357 = vld [vmem:[%s173 + $0x4e0] sm:$0xff]
        %v358 = vld [vmem:[%s173 + $0x4e8] sm:$0xff]
        %v359 = vld [vmem:[%s173 + $0x4f0] sm:$0xff]
        %v360 = vld [vmem:[%s173 + $0x4f8] sm:$0xff]
        %v361 = vpack.c.bf16 %v206, %v201
        %v362 = vpack.c.bf16 %v207, %v202
        %v363 = vpack.c.bf16 %v208, %v203
        %v364 = vpack.c.bf16 %v209, %v204
        %v365 = vpack.c.bf16 %v210, %v205
        %v366 = vpack.c.bf16 %v216, %v211
        %v367 = vpack.c.bf16 %v217, %v212
        %v368 = vpack.c.bf16 %v218, %v213
        %v369 = vpack.c.bf16 %v219, %v214
        %v370 = vpack.c.bf16 %v220, %v215
        %v371 = vpack.c.bf16 %v226, %v221
        %v372 = vpack.c.bf16 %v227, %v222
        %v373 = vpack.c.bf16 %v228, %v223
        %v374 = vpack.c.bf16 %v229, %v224
        %v375 = vpack.c.bf16 %v230, %v225
        %v376 = vpack.c.bf16 %v236, %v231
        %v377 = vpack.c.bf16 %v237, %v232
        %v378 = vpack.c.bf16 %v238, %v233
        %v379 = vpack.c.bf16 %v239, %v234
        %v380 = vpack.c.bf16 %v240, %v235
        %v381 = vpack.c.bf16 %v246, %v241
        %v382 = vpack.c.bf16 %v247, %v242
        %v383 = vpack.c.bf16 %v248, %v243
        %v384 = vpack.c.bf16 %v249, %v244
        %v385 = vpack.c.bf16 %v250, %v245
        %v386 = vpack.c.bf16 %v256, %v251
        %v387 = vpack.c.bf16 %v257, %v252
        %v388 = vpack.c.bf16 %v258, %v253
        %v389 = vpack.c.bf16 %v259, %v254
        %v390 = vpack.c.bf16 %v260, %v255
        %v391 = vpack.c.bf16 %v266, %v261
        %v392 = vpack.c.bf16 %v267, %v262
        %v393 = vpack.c.bf16 %v268, %v263
        %v394 = vpack.c.bf16 %v269, %v264
        %v395 = vpack.c.bf16 %v270, %v265
        %v396 = vpack.c.bf16 %v276, %v271
        %v397 = vpack.c.bf16 %v277, %v272
        %v398 = vpack.c.bf16 %v278, %v273
        %v399 = vpack.c.bf16 %v279, %v274
        %v400 = vpack.c.bf16 %v280, %v275
        %v401 = vpack.c.bf16 %v286, %v281
        %v402 = vpack.c.bf16 %v287, %v282
        %v403 = vpack.c.bf16 %v288, %v283
        %v404 = vpack.c.bf16 %v289, %v284
        %v405 = vpack.c.bf16 %v290, %v285
        %v406 = vpack.c.bf16 %v296, %v291
        %v407 = vpack.c.bf16 %v297, %v292
        %v408 = vpack.c.bf16 %v298, %v293
        %v409 = vpack.c.bf16 %v299, %v294
        %v410 = vpack.c.bf16 %v300, %v295
        %v411 = vpack.c.bf16 %v306, %v301
        %v412 = vpack.c.bf16 %v307, %v302
        %v413 = vpack.c.bf16 %v308, %v303
        %v414 = vpack.c.bf16 %v309, %v304
        %v415 = vpack.c.bf16 %v310, %v305
        %v416 = vpack.c.bf16 %v316, %v311
        %v417 = vpack.c.bf16 %v317, %v312
        %v418 = vpack.c.bf16 %v318, %v313
        %v419 = vpack.c.bf16 %v319, %v314
        %v420 = vpack.c.bf16 %v320, %v315
        %v421 = vpack.c.bf16 %v326, %v321
        %v422 = vpack.c.bf16 %v327, %v322
        %v423 = vpack.c.bf16 %v328, %v323
        %v424 = vpack.c.bf16 %v329, %v324
        %v425 = vpack.c.bf16 %v330, %v325
        %v426 = vpack.c.bf16 %v336, %v331
        %v427 = vpack.c.bf16 %v337, %v332
        %v428 = vpack.c.bf16 %v338, %v333
        %v429 = vpack.c.bf16 %v339, %v334
        %v430 = vpack.c.bf16 %v340, %v335
        %v431 = vpack.c.bf16 %v346, %v341
        %v432 = vpack.c.bf16 %v347, %v342
        %v433 = vpack.c.bf16 %v348, %v343
        %v434 = vpack.c.bf16 %v349, %v344
        %v435 = vpack.c.bf16 %v350, %v345
        %v436 = vpack.c.bf16 %v356, %v351
        %v437 = vpack.c.bf16 %v357, %v352
        %v438 = vpack.c.bf16 %v358, %v353
        %v439 = vpack.c.bf16 %v359, %v354
        %v440 = vpack.c.bf16 %v360, %v355
        %v441 = vld [vmem:[#allocation5] sm:$0xff]
        %v442 = vld [vmem:[#allocation5 + $0x8] sm:$0xf]
        %v443 = vld [vmem:[#allocation5 + $0xc] sm:$0xff]
        %v444 = vld [vmem:[#allocation5 + $0x14] sm:$0xf]
        %v445 = vld [vmem:[#allocation5 + $0x18] sm:$0xff]
        %v446 = vld [vmem:[#allocation5 + $0x20] sm:$0xf]
        %v447 = vld [vmem:[#allocation5 + $0x24] sm:$0xff]
        %v448 = vld [vmem:[#allocation5 + $0x2c] sm:$0xf]
        %v449 = vld [vmem:[#allocation5 + $0x30] sm:$0xff]
        %v450 = vld [vmem:[#allocation5 + $0x38] sm:$0xf]
        %v451 = vld [vmem:[#allocation5 + $0x3c] sm:$0xff]
        %v452 = vld [vmem:[#allocation5 + $0x44] sm:$0xf]
        %v453 = vld [vmem:[#allocation5 + $0x48] sm:$0xff]
        %v454 = vld [vmem:[#allocation5 + $0x50] sm:$0xf]
        %v455 = vld [vmem:[#allocation5 + $0x54] sm:$0xff]
        %v456 = vld [vmem:[#allocation5 + $0x5c] sm:$0xf]
        %v457 = vld [vmem:[#allocation5 + $0x60] sm:$0xff]
        %v458 = vld [vmem:[#allocation5 + $0x68] sm:$0xf]
        %v459 = vld [vmem:[#allocation5 + $0x6c] sm:$0xff]
        %v460 = vld [vmem:[#allocation5 + $0x74] sm:$0xf]
        %v461 = vld [vmem:[#allocation5 + $0x78] sm:$0xff]
        %v462 = vld [vmem:[#allocation5 + $0x80] sm:$0xf]
        %v463 = vld [vmem:[#allocation5 + $0x84] sm:$0xff]
        %v464 = vld [vmem:[#allocation5 + $0x8c] sm:$0xf]
        %v465 = vld [vmem:[#allocation5 + $0x90] sm:$0xff]
        %v466 = vld [vmem:[#allocation5 + $0x98] sm:$0xf]
        %v467 = vld [vmem:[#allocation5 + $0x9c] sm:$0xff]
        %v468 = vld [vmem:[#allocation5 + $0xa4] sm:$0xf]
        %v469 = vld [vmem:[#allocation5 + $0xa8] sm:$0xff]
        %v470 = vld [vmem:[#allocation5 + $0xb0] sm:$0xf]
        %v471 = vld [vmem:[#allocation5 + $0xb4] sm:$0xff]
        %v472 = vld [vmem:[#allocation5 + $0xbc] sm:$0xf]
        %v473 = vld [vmem:[#allocation5 + $0xc0] sm:$0xff]
        %v474 = vld [vmem:[#allocation5 + $0xc8] sm:$0xf]
        %v475 = vld [vmem:[#allocation5 + $0xcc] sm:$0xff]
        %v476 = vld [vmem:[#allocation5 + $0xd4] sm:$0xf]
        %v477 = vld [vmem:[#allocation5 + $0xd8] sm:$0xff]
        %v478 = vld [vmem:[#allocation5 + $0xe0] sm:$0xf]
        %v479 = vld [vmem:[#allocation5 + $0xe4] sm:$0xff]
        %v480 = vld [vmem:[#allocation5 + $0xec] sm:$0xf]
        %v481 = vld [vmem:[#allocation5 + $0xf0] sm:$0xff]
        %v482 = vld [vmem:[#allocation5 + $0xf8] sm:$0xf]
        %v483 = vld [vmem:[#allocation5 + $0xfc] sm:$0xff]
        %v484 = vld [vmem:[#allocation5 + $0x104] sm:$0xf]
        %v485 = vld [vmem:[#allocation5 + $0x108] sm:$0xff]
        %v486 = vld [vmem:[#allocation5 + $0x110] sm:$0xf]
        %v487 = vld [vmem:[#allocation5 + $0x114] sm:$0xff]
        %v488 = vld [vmem:[#allocation5 + $0x11c] sm:$0xf]
        %v489 = vld [vmem:[#allocation5 + $0x120] sm:$0xff]
        %v490 = vld [vmem:[#allocation5 + $0x128] sm:$0xf]
        %v491 = vld [vmem:[#allocation5 + $0x12c] sm:$0xff]
        %v492 = vld [vmem:[#allocation5 + $0x134] sm:$0xf]
        %v493 = vld [vmem:[#allocation5 + $0x138] sm:$0xff]
        %v494 = vld [vmem:[#allocation5 + $0x140] sm:$0xf]
        %v495 = vld [vmem:[#allocation5 + $0x144] sm:$0xff]
        %v496 = vld [vmem:[#allocation5 + $0x14c] sm:$0xf]
        %v497 = vld [vmem:[#allocation5 + $0x150] sm:$0xff]
        %v498 = vld [vmem:[#allocation5 + $0x158] sm:$0xf]
        %v499 = vld [vmem:[#allocation5 + $0x15c] sm:$0xff]
        %v500 = vld [vmem:[#allocation5 + $0x164] sm:$0xf]
        %v501 = vld [vmem:[#allocation5 + $0x168] sm:$0xff]
        %v502 = vld [vmem:[#allocation5 + $0x170] sm:$0xf]
        %v503 = vld [vmem:[#allocation5 + $0x174] sm:$0xff]
        %v504 = vld [vmem:[#allocation5 + $0x17c] sm:$0xf]
        %v505 = vld [vmem:[#allocation5 + $0x180] sm:$0xff]
        %v506 = vld [vmem:[#allocation5 + $0x188] sm:$0xf]
        %v507 = vld [vmem:[#allocation5 + $0x18c] sm:$0xff]
        %v508 = vld [vmem:[#allocation5 + $0x194] sm:$0xf]
        %v509 = vld [vmem:[#allocation5 + $0x198] sm:$0xff]
        %v510 = vld [vmem:[#allocation5 + $0x1a0] sm:$0xf]
        %v511 = vld [vmem:[#allocation5 + $0x1a4] sm:$0xff]
        %v512 = vld [vmem:[#allocation5 + $0x1ac] sm:$0xf]
        %v513 = vld [vmem:[#allocation5 + $0x1b0] sm:$0xff]
        %v514 = vld [vmem:[#allocation5 + $0x1b8] sm:$0xf]
        %v515 = vld [vmem:[#allocation5 + $0x1bc] sm:$0xff]
        %v516 = vld [vmem:[#allocation5 + $0x1c4] sm:$0xf]
        %v517 = vld [vmem:[#allocation5 + $0x1c8] sm:$0xff]
        %v518 = vld [vmem:[#allocation5 + $0x1d0] sm:$0xf]
        %v519 = vld [vmem:[#allocation5 + $0x1d4] sm:$0xff]
        %v520 = vld [vmem:[#allocation5 + $0x1dc] sm:$0xf]
        %v521 = vld [vmem:[#allocation5 + $0x1e0] sm:$0xff]
        %v522 = vld [vmem:[#allocation5 + $0x1e8] sm:$0xf]
        %v523 = vld [vmem:[#allocation5 + $0x1ec] sm:$0xff]
        %v524 = vld [vmem:[#allocation5 + $0x1f4] sm:$0xf]
        %v525 = vld [vmem:[#allocation5 + $0x1f8] sm:$0xff]
        %v526 = vld [vmem:[#allocation5 + $0x200] sm:$0xf]
        %v527 = vld [vmem:[#allocation5 + $0x204] sm:$0xff]
        %v528 = vld [vmem:[#allocation5 + $0x20c] sm:$0xf]
        %v529 = vld [vmem:[#allocation5 + $0x210] sm:$0xff]
        %v530 = vld [vmem:[#allocation5 + $0x218] sm:$0xf]
        %v531 = vld [vmem:[#allocation5 + $0x21c] sm:$0xff]
        %v532 = vld [vmem:[#allocation5 + $0x224] sm:$0xf]
        %v533 = vld [vmem:[#allocation5 + $0x228] sm:$0xff]
        %v534 = vld [vmem:[#allocation5 + $0x230] sm:$0xf]
        %v535 = vld [vmem:[#allocation5 + $0x234] sm:$0xff]
        %v536 = vld [vmem:[#allocation5 + $0x23c] sm:$0xf]
        %v537 = vld [vmem:[#allocation5 + $0x240] sm:$0xff]
        %v538 = vld [vmem:[#allocation5 + $0x248] sm:$0xf]
        %v539 = vld [vmem:[#allocation5 + $0x24c] sm:$0xff]
        %v540 = vld [vmem:[#allocation5 + $0x254] sm:$0xf]
        %v541 = vld [vmem:[#allocation5 + $0x258] sm:$0xff]
        %v542 = vld [vmem:[#allocation5 + $0x260] sm:$0xf]
        %v543 = vld [vmem:[#allocation5 + $0x264] sm:$0xff]
        %v544 = vld [vmem:[#allocation5 + $0x26c] sm:$0xf]
        %v545 = vld [vmem:[#allocation5 + $0x270] sm:$0xff]
        %v546 = vld [vmem:[#allocation5 + $0x278] sm:$0xf]
        %v547 = vld [vmem:[#allocation5 + $0x27c] sm:$0xff]
        %v548 = vld [vmem:[#allocation5 + $0x284] sm:$0xf]
        %v549 = vld [vmem:[#allocation5 + $0x288] sm:$0xff]
        %v550 = vld [vmem:[#allocation5 + $0x290] sm:$0xf]
        %v551 = vld [vmem:[#allocation5 + $0x294] sm:$0xff]
        %v552 = vld [vmem:[#allocation5 + $0x29c] sm:$0xf]
        %v553 = vld [vmem:[#allocation5 + $0x2a0] sm:$0xff]
        %v554 = vld [vmem:[#allocation5 + $0x2a8] sm:$0xf]
        %v555 = vld [vmem:[#allocation5 + $0x2ac] sm:$0xff]
        %v556 = vld [vmem:[#allocation5 + $0x2b4] sm:$0xf]
        %v557 = vld [vmem:[#allocation5 + $0x2b8] sm:$0xff]
        %v558 = vld [vmem:[#allocation5 + $0x2c0] sm:$0xf]
        %v559 = vld [vmem:[#allocation5 + $0x2c4] sm:$0xff]
        %v560 = vld [vmem:[#allocation5 + $0x2cc] sm:$0xf]
        %v561 = vld [vmem:[#allocation5 + $0x2d0] sm:$0xff]
        %v562 = vld [vmem:[#allocation5 + $0x2d8] sm:$0xf]
        %v563 = vld [vmem:[#allocation5 + $0x2dc] sm:$0xff]
        %v564 = vld [vmem:[#allocation5 + $0x2e4] sm:$0xf]
        %v565 = vld [vmem:[#allocation5 + $0x2e8] sm:$0xff]
        %v566 = vld [vmem:[#allocation5 + $0x2f0] sm:$0xf]
        %v567 = vld [vmem:[#allocation5 + $0x2f4] sm:$0xff]
        %v568 = vld [vmem:[#allocation5 + $0x2fc] sm:$0xf]
        %v569 = vld [vmem:[#allocation5 + $0x300] sm:$0xff]
        %v570 = vld [vmem:[#allocation5 + $0x308] sm:$0xf]
        %v571 = vld [vmem:[#allocation5 + $0x30c] sm:$0xff]
        %v572 = vld [vmem:[#allocation5 + $0x314] sm:$0xf]
        %v573 = vld [vmem:[#allocation5 + $0x318] sm:$0xff]
        %v574 = vld [vmem:[#allocation5 + $0x320] sm:$0xf]
        %v575 = vld [vmem:[#allocation5 + $0x324] sm:$0xff]
        %v576 = vld [vmem:[#allocation5 + $0x32c] sm:$0xf]
        %v577 = vld [vmem:[#allocation5 + $0x330] sm:$0xff]
        %v578 = vld [vmem:[#allocation5 + $0x338] sm:$0xf]
        %v579 = vld [vmem:[#allocation5 + $0x33c] sm:$0xff]
        %v580 = vld [vmem:[#allocation5 + $0x344] sm:$0xf]
        %v581 = vld [vmem:[#allocation5 + $0x348] sm:$0xff]
        %v582 = vld [vmem:[#allocation5 + $0x350] sm:$0xf]
        %v583 = vld [vmem:[#allocation5 + $0x354] sm:$0xff]
        %v584 = vld [vmem:[#allocation5 + $0x35c] sm:$0xf]
        %v585 = vld [vmem:[#allocation5 + $0x360] sm:$0xff]
        %v586 = vld [vmem:[#allocation5 + $0x368] sm:$0xf]
        %v587 = vld [vmem:[#allocation5 + $0x36c] sm:$0xff]
        %v588 = vld [vmem:[#allocation5 + $0x374] sm:$0xf]
        %v589 = vld [vmem:[#allocation5 + $0x378] sm:$0xff]
        %v590 = vld [vmem:[#allocation5 + $0x380] sm:$0xf]
        %v591 = vld [vmem:[#allocation5 + $0x384] sm:$0xff]
        %v592 = vld [vmem:[#allocation5 + $0x38c] sm:$0xf]
        %v593 = vld [vmem:[#allocation5 + $0x390] sm:$0xff]
        %v594 = vld [vmem:[#allocation5 + $0x398] sm:$0xf]
        %v595 = vld [vmem:[#allocation5 + $0x39c] sm:$0xff]
        %v596 = vld [vmem:[#allocation5 + $0x3a4] sm:$0xf]
        %v597 = vld [vmem:[#allocation5 + $0x3a8] sm:$0xff]
        %v598 = vld [vmem:[#allocation5 + $0x3b0] sm:$0xf]
        %v599 = vld [vmem:[#allocation5 + $0x3b4] sm:$0xff]
        %v600 = vld [vmem:[#allocation5 + $0x3bc] sm:$0xf]
        %v761 = vunpack.c.l.b16 %v441
        %v762 = vunpack.c.h.b16 %v441
        %v763 = vunpack.c.l.b16 %v442
        %v764 = vunpack.c.l.b16 %v443
        %v765 = vunpack.c.h.b16 %v443
        %v766 = vunpack.c.l.b16 %v444
        %v767 = vunpack.c.l.b16 %v445
        %v768 = vunpack.c.h.b16 %v445
        %v769 = vunpack.c.l.b16 %v446
        %v770 = vunpack.c.l.b16 %v447
        %v771 = vunpack.c.h.b16 %v447
        %v772 = vunpack.c.l.b16 %v448
        %v773 = vunpack.c.l.b16 %v449
        %v774 = vunpack.c.h.b16 %v449
        %v775 = vunpack.c.l.b16 %v450
        %v776 = vunpack.c.l.b16 %v451
        %v777 = vunpack.c.h.b16 %v451
        %v778 = vunpack.c.l.b16 %v452
        %v779 = vunpack.c.l.b16 %v453
        %v780 = vunpack.c.h.b16 %v453
        %v781 = vunpack.c.l.b16 %v454
        %v782 = vunpack.c.l.b16 %v455
        %v783 = vunpack.c.h.b16 %v455
        %v784 = vunpack.c.l.b16 %v456
        %v785 = vunpack.c.l.b16 %v457
        %v786 = vunpack.c.h.b16 %v457
        %v787 = vunpack.c.l.b16 %v458
        %v788 = vunpack.c.l.b16 %v459
        %v789 = vunpack.c.h.b16 %v459
        %v790 = vunpack.c.l.b16 %v460
        %v791 = vunpack.c.l.b16 %v461
        %v792 = vunpack.c.h.b16 %v461
        %v793 = vunpack.c.l.b16 %v462
        %v794 = vunpack.c.l.b16 %v463
        %v795 = vunpack.c.h.b16 %v463
        %v796 = vunpack.c.l.b16 %v464
        %v797 = vunpack.c.l.b16 %v465
        %v798 = vunpack.c.h.b16 %v465
        %v799 = vunpack.c.l.b16 %v466
        %v800 = vunpack.c.l.b16 %v467
        %v801 = vunpack.c.h.b16 %v467
        %v802 = vunpack.c.l.b16 %v468
        %v803 = vunpack.c.l.b16 %v469
        %v804 = vunpack.c.h.b16 %v469
        %v805 = vunpack.c.l.b16 %v470
        %v806 = vunpack.c.l.b16 %v471
        %v807 = vunpack.c.h.b16 %v471
        %v808 = vunpack.c.l.b16 %v472
        %v809 = vunpack.c.l.b16 %v473
        %v810 = vunpack.c.h.b16 %v473
        %v811 = vunpack.c.l.b16 %v474
        %v812 = vunpack.c.l.b16 %v475
        %v813 = vunpack.c.h.b16 %v475
        %v814 = vunpack.c.l.b16 %v476
        %v815 = vunpack.c.l.b16 %v477
        %v816 = vunpack.c.h.b16 %v477
        %v817 = vunpack.c.l.b16 %v478
        %v818 = vunpack.c.l.b16 %v479
        %v819 = vunpack.c.h.b16 %v479
        %v820 = vunpack.c.l.b16 %v480
        %v821 = vunpack.c.l.b16 %v481
        %v822 = vunpack.c.h.b16 %v481
        %v823 = vunpack.c.l.b16 %v482
        %v824 = vunpack.c.l.b16 %v483
        %v825 = vunpack.c.h.b16 %v483
        %v826 = vunpack.c.l.b16 %v484
        %v827 = vunpack.c.l.b16 %v485
        %v828 = vunpack.c.h.b16 %v485
        %v829 = vunpack.c.l.b16 %v486
        %v830 = vunpack.c.l.b16 %v487
        %v831 = vunpack.c.h.b16 %v487
        %v832 = vunpack.c.l.b16 %v488
        %v833 = vunpack.c.l.b16 %v489
        %v834 = vunpack.c.h.b16 %v489
        %v835 = vunpack.c.l.b16 %v490
        %v836 = vunpack.c.l.b16 %v491
        %v837 = vunpack.c.h.b16 %v491
        %v838 = vunpack.c.l.b16 %v492
        %v839 = vunpack.c.l.b16 %v493
        %v840 = vunpack.c.h.b16 %v493
        %v841 = vunpack.c.l.b16 %v494
        %v842 = vunpack.c.l.b16 %v495
        %v843 = vunpack.c.h.b16 %v495
        %v844 = vunpack.c.l.b16 %v496
        %v845 = vunpack.c.l.b16 %v497
        %v846 = vunpack.c.h.b16 %v497
        %v847 = vunpack.c.l.b16 %v498
        %v848 = vunpack.c.l.b16 %v499
        %v849 = vunpack.c.h.b16 %v499
        %v850 = vunpack.c.l.b16 %v500
        %v851 = vunpack.c.l.b16 %v501
        %v852 = vunpack.c.h.b16 %v501
        %v853 = vunpack.c.l.b16 %v502
        %v854 = vunpack.c.l.b16 %v503
        %v855 = vunpack.c.h.b16 %v503
        %v856 = vunpack.c.l.b16 %v504
        %v857 = vunpack.c.l.b16 %v505
        %v858 = vunpack.c.h.b16 %v505
        %v859 = vunpack.c.l.b16 %v506
        %v860 = vunpack.c.l.b16 %v507
        %v861 = vunpack.c.h.b16 %v507
        %v862 = vunpack.c.l.b16 %v508
        %v863 = vunpack.c.l.b16 %v509
        %v864 = vunpack.c.h.b16 %v509
        %v865 = vunpack.c.l.b16 %v510
        %v866 = vunpack.c.l.b16 %v511
        %v867 = vunpack.c.h.b16 %v511
        %v868 = vunpack.c.l.b16 %v512
        %v869 = vunpack.c.l.b16 %v513
        %v870 = vunpack.c.h.b16 %v513
        %v871 = vunpack.c.l.b16 %v514
        %v872 = vunpack.c.l.b16 %v515
        %v873 = vunpack.c.h.b16 %v515
        %v874 = vunpack.c.l.b16 %v516
        %v875 = vunpack.c.l.b16 %v517
        %v876 = vunpack.c.h.b16 %v517
        %v877 = vunpack.c.l.b16 %v518
        %v878 = vunpack.c.l.b16 %v519
        %v879 = vunpack.c.h.b16 %v519
        %v880 = vunpack.c.l.b16 %v520
        %v881 = vunpack.c.l.b16 %v521
        %v882 = vunpack.c.h.b16 %v521
        %v883 = vunpack.c.l.b16 %v522
        %v884 = vunpack.c.l.b16 %v523
        %v885 = vunpack.c.h.b16 %v523
        %v886 = vunpack.c.l.b16 %v524
        %v887 = vunpack.c.l.b16 %v525
        %v888 = vunpack.c.h.b16 %v525
        %v889 = vunpack.c.l.b16 %v526
        %v890 = vunpack.c.l.b16 %v527
        %v891 = vunpack.c.h.b16 %v527
        %v892 = vunpack.c.l.b16 %v528
        %v893 = vunpack.c.l.b16 %v529
        %v894 = vunpack.c.h.b16 %v529
        %v895 = vunpack.c.l.b16 %v530
        %v896 = vunpack.c.l.b16 %v531
        %v897 = vunpack.c.h.b16 %v531
        %v898 = vunpack.c.l.b16 %v532
        %v899 = vunpack.c.l.b16 %v533
        %v900 = vunpack.c.h.b16 %v533
        %v901 = vunpack.c.l.b16 %v534
        %v902 = vunpack.c.l.b16 %v535
        %v903 = vunpack.c.h.b16 %v535
        %v904 = vunpack.c.l.b16 %v536
        %v905 = vunpack.c.l.b16 %v537
        %v906 = vunpack.c.h.b16 %v537
        %v907 = vunpack.c.l.b16 %v538
        %v908 = vunpack.c.l.b16 %v539
        %v909 = vunpack.c.h.b16 %v539
        %v910 = vunpack.c.l.b16 %v540
        %v911 = vunpack.c.l.b16 %v541
        %v912 = vunpack.c.h.b16 %v541
        %v913 = vunpack.c.l.b16 %v542
        %v914 = vunpack.c.l.b16 %v543
        %v915 = vunpack.c.h.b16 %v543
        %v916 = vunpack.c.l.b16 %v544
        %v917 = vunpack.c.l.b16 %v545
        %v918 = vunpack.c.h.b16 %v545
        %v919 = vunpack.c.l.b16 %v546
        %v920 = vunpack.c.l.b16 %v547
        %v921 = vunpack.c.h.b16 %v547
        %v922 = vunpack.c.l.b16 %v548
        %v923 = vunpack.c.l.b16 %v549
        %v924 = vunpack.c.h.b16 %v549
        %v925 = vunpack.c.l.b16 %v550
        %v926 = vunpack.c.l.b16 %v551
        %v927 = vunpack.c.h.b16 %v551
        %v928 = vunpack.c.l.b16 %v552
        %v929 = vunpack.c.l.b16 %v553
        %v930 = vunpack.c.h.b16 %v553
        %v931 = vunpack.c.l.b16 %v554
        %v932 = vunpack.c.l.b16 %v555
        %v933 = vunpack.c.h.b16 %v555
        %v934 = vunpack.c.l.b16 %v556
        %v935 = vunpack.c.l.b16 %v557
        %v936 = vunpack.c.h.b16 %v557
        %v937 = vunpack.c.l.b16 %v558
        %v938 = vunpack.c.l.b16 %v559
        %v939 = vunpack.c.h.b16 %v559
        %v940 = vunpack.c.l.b16 %v560
        %v941 = vunpack.c.l.b16 %v561
        %v942 = vunpack.c.h.b16 %v561
        %v943 = vunpack.c.l.b16 %v562
        %v944 = vunpack.c.l.b16 %v563
        %v945 = vunpack.c.h.b16 %v563
        %v946 = vunpack.c.l.b16 %v564
        %v947 = vunpack.c.l.b16 %v565
        %v948 = vunpack.c.h.b16 %v565
        %v949 = vunpack.c.l.b16 %v566
        %v950 = vunpack.c.l.b16 %v567
        %v951 = vunpack.c.h.b16 %v567
        %v952 = vunpack.c.l.b16 %v568
        %v953 = vunpack.c.l.b16 %v569
        %v954 = vunpack.c.h.b16 %v569
        %v955 = vunpack.c.l.b16 %v570
        %v956 = vunpack.c.l.b16 %v571
        %v957 = vunpack.c.h.b16 %v571
        %v958 = vunpack.c.l.b16 %v572
        %v959 = vunpack.c.l.b16 %v573
        %v960 = vunpack.c.h.b16 %v573
        %v961 = vunpack.c.l.b16 %v574
        %v962 = vunpack.c.l.b16 %v575
        %v963 = vunpack.c.h.b16 %v575
        %v964 = vunpack.c.l.b16 %v576
        %v965 = vunpack.c.l.b16 %v577
        %v966 = vunpack.c.h.b16 %v577
        %v967 = vunpack.c.l.b16 %v578
        %v968 = vunpack.c.l.b16 %v579
        %v969 = vunpack.c.h.b16 %v579
        %v970 = vunpack.c.l.b16 %v580
        %v971 = vunpack.c.l.b16 %v581
        %v972 = vunpack.c.h.b16 %v581
        %v973 = vunpack.c.l.b16 %v582
        %v974 = vunpack.c.l.b16 %v583
        %v975 = vunpack.c.h.b16 %v583
        %v976 = vunpack.c.l.b16 %v584
        %v977 = vunpack.c.l.b16 %v585
        %v978 = vunpack.c.h.b16 %v585
        %v979 = vunpack.c.l.b16 %v586
        %v980 = vunpack.c.l.b16 %v587
        %v981 = vunpack.c.h.b16 %v587
        %v982 = vunpack.c.l.b16 %v588
        %v983 = vunpack.c.l.b16 %v589
        %v984 = vunpack.c.h.b16 %v589
        %v985 = vunpack.c.l.b16 %v590
        %v986 = vunpack.c.l.b16 %v591
        %v987 = vunpack.c.h.b16 %v591
        %v988 = vunpack.c.l.b16 %v592
        %v989 = vunpack.c.l.b16 %v593
        %v990 = vunpack.c.h.b16 %v593
        %v991 = vunpack.c.l.b16 %v594
        %v992 = vunpack.c.l.b16 %v595
        %v993 = vunpack.c.h.b16 %v595
        %v994 = vunpack.c.l.b16 %v596
        %v995 = vunpack.c.l.b16 %v597
        %v996 = vunpack.c.h.b16 %v597
        %v997 = vunpack.c.l.b16 %v598
        %v998 = vunpack.c.l.b16 %v599
        %v999 = vunpack.c.h.b16 %v599
        %v1000 = vunpack.c.l.b16 %v600
        %v1001 = vpack.c.b16 %v764, %v761
        %v1002 = vpack.c.b16 %v765, %v762
        %v1003 = vpack.c.b16 %v766, %v763
        %v1004 = vpack.c.b16 %v770, %v767
        %v1005 = vpack.c.b16 %v771, %v768
        %v1006 = vpack.c.b16 %v772, %v769
        %v1007 = vpack.c.b16 %v776, %v773
        %v1008 = vpack.c.b16 %v777, %v774
        %v1009 = vpack.c.b16 %v778, %v775
        %v1010 = vpack.c.b16 %v782, %v779
        %v1011 = vpack.c.b16 %v783, %v780
        %v1012 = vpack.c.b16 %v784, %v781
        %v1013 = vpack.c.b16 %v788, %v785
        %v1014 = vpack.c.b16 %v789, %v786
        %v1015 = vpack.c.b16 %v790, %v787
        %v1016 = vpack.c.b16 %v794, %v791
        %v1017 = vpack.c.b16 %v795, %v792
        %v1018 = vpack.c.b16 %v796, %v793
        %v1019 = vpack.c.b16 %v800, %v797
        %v1020 = vpack.c.b16 %v801, %v798
        %v1021 = vpack.c.b16 %v802, %v799
        %v1022 = vpack.c.b16 %v806, %v803
        %v1023 = vpack.c.b16 %v807, %v804
        %v1024 = vpack.c.b16 %v808, %v805
        %v1025 = vpack.c.b16 %v812, %v809
        %v1026 = vpack.c.b16 %v813, %v810
        %v1027 = vpack.c.b16 %v814, %v811
        %v1028 = vpack.c.b16 %v818, %v815
        %v1029 = vpack.c.b16 %v819, %v816
        %v1030 = vpack.c.b16 %v820, %v817
        %v1031 = vpack.c.b16 %v824, %v821
        %v1032 = vpack.c.b16 %v825, %v822
        %v1033 = vpack.c.b16 %v826, %v823
        %v1034 = vpack.c.b16 %v830, %v827
        %v1035 = vpack.c.b16 %v831, %v828
        %v1036 = vpack.c.b16 %v832, %v829
        %v1037 = vpack.c.b16 %v836, %v833
        %v1038 = vpack.c.b16 %v837, %v834
        %v1039 = vpack.c.b16 %v838, %v835
        %v1040 = vpack.c.b16 %v842, %v839
        %v1041 = vpack.c.b16 %v843, %v840
        %v1042 = vpack.c.b16 %v844, %v841
        %v1043 = vpack.c.b16 %v848, %v845
        %v1044 = vpack.c.b16 %v849, %v846
        %v1045 = vpack.c.b16 %v850, %v847
        %v1046 = vpack.c.b16 %v854, %v851
        %v1047 = vpack.c.b16 %v855, %v852
        %v1048 = vpack.c.b16 %v856, %v853
        %v1049 = vpack.c.b16 %v860, %v857
        %v1050 = vpack.c.b16 %v861, %v858
        %v1051 = vpack.c.b16 %v862, %v859
        %v1052 = vpack.c.b16 %v866, %v863
        %v1053 = vpack.c.b16 %v867, %v864
        %v1054 = vpack.c.b16 %v868, %v865
        %v1055 = vpack.c.b16 %v872, %v869
        %v1056 = vpack.c.b16 %v873, %v870
        %v1057 = vpack.c.b16 %v874, %v871
        %v1058 = vpack.c.b16 %v878, %v875
        %v1059 = vpack.c.b16 %v879, %v876
        %v1060 = vpack.c.b16 %v880, %v877
        %v1061 = vpack.c.b16 %v884, %v881
        %v1062 = vpack.c.b16 %v885, %v882
        %v1063 = vpack.c.b16 %v886, %v883
        %v1064 = vpack.c.b16 %v890, %v887
        %v1065 = vpack.c.b16 %v891, %v888
        %v1066 = vpack.c.b16 %v892, %v889
        %v1067 = vpack.c.b16 %v896, %v893
        %v1068 = vpack.c.b16 %v897, %v894
        %v1069 = vpack.c.b16 %v898, %v895
        %v1070 = vpack.c.b16 %v902, %v899
        %v1071 = vpack.c.b16 %v903, %v900
        %v1072 = vpack.c.b16 %v904, %v901
        %v1073 = vpack.c.b16 %v908, %v905
        %v1074 = vpack.c.b16 %v909, %v906
        %v1075 = vpack.c.b16 %v910, %v907
        %v1076 = vpack.c.b16 %v914, %v911
        %v1077 = vpack.c.b16 %v915, %v912
        %v1078 = vpack.c.b16 %v916, %v913
        %v1079 = vpack.c.b16 %v920, %v917
        %v1080 = vpack.c.b16 %v921, %v918
        %v1081 = vpack.c.b16 %v922, %v919
        %v1082 = vpack.c.b16 %v926, %v923
        %v1083 = vpack.c.b16 %v927, %v924
        %v1084 = vpack.c.b16 %v928, %v925
        %v1085 = vpack.c.b16 %v932, %v929
        %v1086 = vpack.c.b16 %v933, %v930
        %v1087 = vpack.c.b16 %v934, %v931
        %v1088 = vpack.c.b16 %v938, %v935
        %v1089 = vpack.c.b16 %v939, %v936
        %v1090 = vpack.c.b16 %v940, %v937
        %v1091 = vpack.c.b16 %v944, %v941
        %v1092 = vpack.c.b16 %v945, %v942
        %v1093 = vpack.c.b16 %v946, %v943
        %v1094 = vpack.c.b16 %v950, %v947
        %v1095 = vpack.c.b16 %v951, %v948
        %v1096 = vpack.c.b16 %v952, %v949
        %v1097 = vpack.c.b16 %v956, %v953
        %v1098 = vpack.c.b16 %v957, %v954
        %v1099 = vpack.c.b16 %v958, %v955
        %v1100 = vpack.c.b16 %v962, %v959
        %v1101 = vpack.c.b16 %v963, %v960
        %v1102 = vpack.c.b16 %v964, %v961
        %v1103 = vpack.c.b16 %v968, %v965
        %v1104 = vpack.c.b16 %v969, %v966
        %v1105 = vpack.c.b16 %v970, %v967
        %v1106 = vpack.c.b16 %v974, %v971
        %v1107 = vpack.c.b16 %v975, %v972
        %v1108 = vpack.c.b16 %v976, %v973
        %v1109 = vpack.c.b16 %v980, %v977
        %v1110 = vpack.c.b16 %v981, %v978
        %v1111 = vpack.c.b16 %v982, %v979
        %v1112 = vpack.c.b16 %v986, %v983
        %v1113 = vpack.c.b16 %v987, %v984
        %v1114 = vpack.c.b16 %v988, %v985
        %v1115 = vpack.c.b16 %v992, %v989
        %v1116 = vpack.c.b16 %v993, %v990
        %v1117 = vpack.c.b16 %v994, %v991
        %v1118 = vpack.c.b16 %v998, %v995
        %v1119 = vpack.c.b16 %v999, %v996
        %v1120 = vpack.c.b16 %v1000, %v997
        %1241 = vmatpush.bf16.msra.mxu0 %v1022
        %1242 = vmatpush.bf16.msra.mxu0 %v1019
        %1243 = vmatpush.bf16.msra.mxu0 %v1016
        %1244 = vmatpush.bf16.msra.mxu0 %v1013
        %1245 = vmatpush.bf16.msra.mxu0 %v1010
        %1246 = vmatpush.bf16.msra.mxu0 %v1007
        %1247 = vmatpush.bf16.msra.mxu0 %v1004
        %1248 = vmatpush.bf16.msra.mxu0 %v1001
        %1249 = vmatmul.bf16.gmra.mxu0 %v361
        %v1250 = vpop.f32.mrf.mxu0
        %v1251 = vadd.f32 0.0, %v1250
        %v1252 = vpop.f32.mrf.mxu0
        %v1253 = vadd.f32 0.0, %v1252
        %1254 = vmatmul.bf16.gmra.mxu0 %v366
        %v1255 = vpop.f32.mrf.mxu0
        %v1256 = vadd.f32 0.0, %v1255
        %v1257 = vpop.f32.mrf.mxu0
        %v1258 = vadd.f32 0.0, %v1257
        %1259 = vmatmul.bf16.gmra.mxu0 %v371
        %v1260 = vpop.f32.mrf.mxu0
        %v1261 = vadd.f32 0.0, %v1260
        %v1262 = vpop.f32.mrf.mxu0
        %v1263 = vadd.f32 0.0, %v1262
        %1264 = vmatmul.bf16.gmra.mxu0 %v376
        %v1265 = vpop.f32.mrf.mxu0
        %v1266 = vadd.f32 0.0, %v1265
        %v1267 = vpop.f32.mrf.mxu0
        %v1268 = vadd.f32 0.0, %v1267
        %1269 = vmatmul.bf16.gmra.mxu0 %v381
        %v1270 = vpop.f32.mrf.mxu0
        %v1271 = vadd.f32 0.0, %v1270
        %v1272 = vpop.f32.mrf.mxu0
        %v1273 = vadd.f32 0.0, %v1272
        %1274 = vmatmul.bf16.gmra.mxu0 %v386
        %v1275 = vpop.f32.mrf.mxu0
        %v1276 = vadd.f32 0.0, %v1275
        %v1277 = vpop.f32.mrf.mxu0
        %v1278 = vadd.f32 0.0, %v1277
        %1279 = vmatmul.bf16.gmra.mxu0 %v391
        %v1280 = vpop.f32.mrf.mxu0
        %v1281 = vadd.f32 0.0, %v1280
        %v1282 = vpop.f32.mrf.mxu0
        %v1283 = vadd.f32 0.0, %v1282
        %1284 = vmatmul.bf16.gmra.mxu0 %v396
        %v1285 = vpop.f32.mrf.mxu0
        %v1286 = vadd.f32 0.0, %v1285
        %v1287 = vpop.f32.mrf.mxu0
        %v1288 = vadd.f32 0.0, %v1287
        %1289 = vmatmul.bf16.gmra.mxu0 %v401
        %v1290 = vpop.f32.mrf.mxu0
        %v1291 = vadd.f32 0.0, %v1290
        %v1292 = vpop.f32.mrf.mxu0
        %v1293 = vadd.f32 0.0, %v1292
        %1294 = vmatmul.bf16.gmra.mxu0 %v406
        %v1295 = vpop.f32.mrf.mxu0
        %v1296 = vadd.f32 0.0, %v1295
        %v1297 = vpop.f32.mrf.mxu0
        %v1298 = vadd.f32 0.0, %v1297
        %1299 = vmatmul.bf16.gmra.mxu0 %v411
        %v1300 = vpop.f32.mrf.mxu0
        %v1301 = vadd.f32 0.0, %v1300
        %v1302 = vpop.f32.mrf.mxu0
        %v1303 = vadd.f32 0.0, %v1302
        %1304 = vmatmul.bf16.gmra.mxu0 %v416
        %v1305 = vpop.f32.mrf.mxu0
        %v1306 = vadd.f32 0.0, %v1305
        %v1307 = vpop.f32.mrf.mxu0
        %v1308 = vadd.f32 0.0, %v1307
        %1309 = vmatmul.bf16.gmra.mxu0 %v421
        %v1310 = vpop.f32.mrf.mxu0
        %v1311 = vadd.f32 0.0, %v1310
        %v1312 = vpop.f32.mrf.mxu0
        %v1313 = vadd.f32 0.0, %v1312
        %1314 = vmatmul.bf16.gmra.mxu0 %v426
        %v1315 = vpop.f32.mrf.mxu0
        %v1316 = vadd.f32 0.0, %v1315
        %v1317 = vpop.f32.mrf.mxu0
        %v1318 = vadd.f32 0.0, %v1317
        %1319 = vmatmul.bf16.gmra.mxu0 %v431
        %v1320 = vpop.f32.mrf.mxu0
        %v1321 = vadd.f32 0.0, %v1320
        %v1322 = vpop.f32.mrf.mxu0
        %v1323 = vadd.f32 0.0, %v1322
        %1324 = vmatmul.bf16.gmra.mxu0 %v436
        %v1325 = vpop.f32.mrf.mxu0
        %v1326 = vadd.f32 0.0, %v1325
        %v1327 = vpop.f32.mrf.mxu0
        %v1328 = vadd.f32 0.0, %v1327
        %1329 = vdwg.mxu0
        %1330 = vmatpush.bf16.msra.mxu0 %v1046
        %1331 = vmatpush.bf16.msra.mxu0 %v1043
        %1332 = vmatpush.bf16.msra.mxu0 %v1040
        %1333 = vmatpush.bf16.msra.mxu0 %v1037
        %1334 = vmatpush.bf16.msra.mxu0 %v1034
        %1335 = vmatpush.bf16.msra.mxu0 %v1031
        %1336 = vmatpush.bf16.msra.mxu0 %v1028
        %1337 = vmatpush.bf16.msra.mxu0 %v1025
        %1338 = vmatmul.bf16.gmra.mxu0 %v362
        %v1339 = vpop.f32.mrf.mxu0
        %v1340 = vadd.f32 %v1251, %v1339
        %v1341 = vpop.f32.mrf.mxu0
        %v1342 = vadd.f32 %v1253, %v1341
        %1343 = vmatmul.bf16.gmra.mxu0 %v367
        %v1344 = vpop.f32.mrf.mxu0
        %v1345 = vadd.f32 %v1256, %v1344
        %v1346 = vpop.f32.mrf.mxu0
        %v1347 = vadd.f32 %v1258, %v1346
        %1348 = vmatmul.bf16.gmra.mxu0 %v372
        %v1349 = vpop.f32.mrf.mxu0
        %v1350 = vadd.f32 %v1261, %v1349
        %v1351 = vpop.f32.mrf.mxu0
        %v1352 = vadd.f32 %v1263, %v1351
        %1353 = vmatmul.bf16.gmra.mxu0 %v377
        %v1354 = vpop.f32.mrf.mxu0
        %v1355 = vadd.f32 %v1266, %v1354
        %v1356 = vpop.f32.mrf.mxu0
        %v1357 = vadd.f32 %v1268, %v1356
        %1358 = vmatmul.bf16.gmra.mxu0 %v382
        %v1359 = vpop.f32.mrf.mxu0
        %v1360 = vadd.f32 %v1271, %v1359
        %v1361 = vpop.f32.mrf.mxu0
        %v1362 = vadd.f32 %v1273, %v1361
        %1363 = vmatmul.bf16.gmra.mxu0 %v387
        %v1364 = vpop.f32.mrf.mxu0
        %v1365 = vadd.f32 %v1276, %v1364
        %v1366 = vpop.f32.mrf.mxu0
        %v1367 = vadd.f32 %v1278, %v1366
        %1368 = vmatmul.bf16.gmra.mxu0 %v392
        %v1369 = vpop.f32.mrf.mxu0
        %v1370 = vadd.f32 %v1281, %v1369
        %v1371 = vpop.f32.mrf.mxu0
        %v1372 = vadd.f32 %v1283, %v1371
        %1373 = vmatmul.bf16.gmra.mxu0 %v397
        %v1374 = vpop.f32.mrf.mxu0
        %v1375 = vadd.f32 %v1286, %v1374
        %v1376 = vpop.f32.mrf.mxu0
        %v1377 = vadd.f32 %v1288, %v1376
        %1378 = vmatmul.bf16.gmra.mxu0 %v402
        %v1379 = vpop.f32.mrf.mxu0
        %v1380 = vadd.f32 %v1291, %v1379
        %v1381 = vpop.f32.mrf.mxu0
        %v1382 = vadd.f32 %v1293, %v1381
        %1383 = vmatmul.bf16.gmra.mxu0 %v407
        %v1384 = vpop.f32.mrf.mxu0
        %v1385 = vadd.f32 %v1296, %v1384
        %v1386 = vpop.f32.mrf.mxu0
        %v1387 = vadd.f32 %v1298, %v1386
        %1388 = vmatmul.bf16.gmra.mxu0 %v412
        %v1389 = vpop.f32.mrf.mxu0
        %v1390 = vadd.f32 %v1301, %v1389
        %v1391 = vpop.f32.mrf.mxu0
        %v1392 = vadd.f32 %v1303, %v1391
        %1393 = vmatmul.bf16.gmra.mxu0 %v417
        %v1394 = vpop.f32.mrf.mxu0
        %v1395 = vadd.f32 %v1306, %v1394
        %v1396 = vpop.f32.mrf.mxu0
        %v1397 = vadd.f32 %v1308, %v1396
        %1398 = vmatmul.bf16.gmra.mxu0 %v422
        %v1399 = vpop.f32.mrf.mxu0
        %v1400 = vadd.f32 %v1311, %v1399
        %v1401 = vpop.f32.mrf.mxu0
        %v1402 = vadd.f32 %v1313, %v1401
        %1403 = vmatmul.bf16.gmra.mxu0 %v427
        %v1404 = vpop.f32.mrf.mxu0
        %v1405 = vadd.f32 %v1316, %v1404
        %v1406 = vpop.f32.mrf.mxu0
        %v1407 = vadd.f32 %v1318, %v1406
        %1408 = vmatmul.bf16.gmra.mxu0 %v432
        %v1409 = vpop.f32.mrf.mxu0
        %v1410 = vadd.f32 %v1321, %v1409
        %v1411 = vpop.f32.mrf.mxu0
        %v1412 = vadd.f32 %v1323, %v1411
        %1413 = vmatmul.bf16.gmra.mxu0 %v437
        %v1414 = vpop.f32.mrf.mxu0
        %v1415 = vadd.f32 %v1326, %v1414
        %v1416 = vpop.f32.mrf.mxu0
        %v1417 = vadd.f32 %v1328, %v1416
        %1418 = vdwg.mxu0
        %1419 = vmatpush.bf16.msra.mxu0 %v1070
        %1420 = vmatpush.bf16.msra.mxu0 %v1067
        %1421 = vmatpush.bf16.msra.mxu0 %v1064
        %1422 = vmatpush.bf16.msra.mxu0 %v1061
        %1423 = vmatpush.bf16.msra.mxu0 %v1058
        %1424 = vmatpush.bf16.msra.mxu0 %v1055
        %1425 = vmatpush.bf16.msra.mxu0 %v1052
        %1426 = vmatpush.bf16.msra.mxu0 %v1049
        %1427 = vmatmul.bf16.gmra.mxu0 %v363
        %v1428 = vpop.f32.mrf.mxu0
        %v1429 = vadd.f32 %v1340, %v1428
        %v1430 = vpop.f32.mrf.mxu0
        %v1431 = vadd.f32 %v1342, %v1430
        %1432 = vmatmul.bf16.gmra.mxu0 %v368
        %v1433 = vpop.f32.mrf.mxu0
        %v1434 = vadd.f32 %v1345, %v1433
        %v1435 = vpop.f32.mrf.mxu0
        %v1436 = vadd.f32 %v1347, %v1435
        %1437 = vmatmul.bf16.gmra.mxu0 %v373
        %v1438 = vpop.f32.mrf.mxu0
        %v1439 = vadd.f32 %v1350, %v1438
        %v1440 = vpop.f32.mrf.mxu0
        %v1441 = vadd.f32 %v1352, %v1440
        %1442 = vmatmul.bf16.gmra.mxu0 %v378
        %v1443 = vpop.f32.mrf.mxu0
        %v1444 = vadd.f32 %v1355, %v1443
        %v1445 = vpop.f32.mrf.mxu0
        %v1446 = vadd.f32 %v1357, %v1445
        %1447 = vmatmul.bf16.gmra.mxu0 %v383
        %v1448 = vpop.f32.mrf.mxu0
        %v1449 = vadd.f32 %v1360, %v1448
        %v1450 = vpop.f32.mrf.mxu0
        %v1451 = vadd.f32 %v1362, %v1450
        %1452 = vmatmul.bf16.gmra.mxu0 %v388
        %v1453 = vpop.f32.mrf.mxu0
        %v1454 = vadd.f32 %v1365, %v1453
        %v1455 = vpop.f32.mrf.mxu0
        %v1456 = vadd.f32 %v1367, %v1455
        %1457 = vmatmul.bf16.gmra.mxu0 %v393
        %v1458 = vpop.f32.mrf.mxu0
        %v1459 = vadd.f32 %v1370, %v1458
        %v1460 = vpop.f32.mrf.mxu0
        %v1461 = vadd.f32 %v1372, %v1460
        %1462 = vmatmul.bf16.gmra.mxu0 %v398
        %v1463 = vpop.f32.mrf.mxu0
        %v1464 = vadd.f32 %v1375, %v1463
        %v1465 = vpop.f32.mrf.mxu0
        %v1466 = vadd.f32 %v1377, %v1465
        %1467 = vmatmul.bf16.gmra.mxu0 %v403
        %v1468 = vpop.f32.mrf.mxu0
        %v1469 = vadd.f32 %v1380, %v1468
        %v1470 = vpop.f32.mrf.mxu0
        %v1471 = vadd.f32 %v1382, %v1470
        %1472 = vmatmul.bf16.gmra.mxu0 %v408
        %v1473 = vpop.f32.mrf.mxu0
        %v1474 = vadd.f32 %v1385, %v1473
        %v1475 = vpop.f32.mrf.mxu0
        %v1476 = vadd.f32 %v1387, %v1475
        %1477 = vmatmul.bf16.gmra.mxu0 %v413
        %v1478 = vpop.f32.mrf.mxu0
        %v1479 = vadd.f32 %v1390, %v1478
        %v1480 = vpop.f32.mrf.mxu0
        %v1481 = vadd.f32 %v1392, %v1480
        %1482 = vmatmul.bf16.gmra.mxu0 %v418
        %v1483 = vpop.f32.mrf.mxu0
        %v1484 = vadd.f32 %v1395, %v1483
        %v1485 = vpop.f32.mrf.mxu0
        %v1486 = vadd.f32 %v1397, %v1485
        %1487 = vmatmul.bf16.gmra.mxu0 %v423
        %v1488 = vpop.f32.mrf.mxu0
        %v1489 = vadd.f32 %v1400, %v1488
        %v1490 = vpop.f32.mrf.mxu0
        %v1491 = vadd.f32 %v1402, %v1490
        %1492 = vmatmul.bf16.gmra.mxu0 %v428
        %v1493 = vpop.f32.mrf.mxu0
        %v1494 = vadd.f32 %v1405, %v1493
        %v1495 = vpop.f32.mrf.mxu0
        %v1496 = vadd.f32 %v1407, %v1495
        %1497 = vmatmul.bf16.gmra.mxu0 %v433
        %v1498 = vpop.f32.mrf.mxu0
        %v1499 = vadd.f32 %v1410, %v1498
        %v1500 = vpop.f32.mrf.mxu0
        %v1501 = vadd.f32 %v1412, %v1500
        %1502 = vmatmul.bf16.gmra.mxu0 %v438
        %v1503 = vpop.f32.mrf.mxu0
        %v1504 = vadd.f32 %v1415, %v1503
        %v1505 = vpop.f32.mrf.mxu0
        %v1506 = vadd.f32 %v1417, %v1505
        %1507 = vdwg.mxu0
        %1508 = vmatpush.bf16.msra.mxu0 %v1094
        %1509 = vmatpush.bf16.msra.mxu0 %v1091
        %1510 = vmatpush.bf16.msra.mxu0 %v1088
        %1511 = vmatpush.bf16.msra.mxu0 %v1085
        %1512 = vmatpush.bf16.msra.mxu0 %v1082
        %1513 = vmatpush.bf16.msra.mxu0 %v1079
        %1514 = vmatpush.bf16.msra.mxu0 %v1076
        %1515 = vmatpush.bf16.msra.mxu0 %v1073
        %1516 = vmatmul.bf16.gmra.mxu0 %v364
        %v1517 = vpop.f32.mrf.mxu0
        %v1518 = vadd.f32 %v1429, %v1517
        %v1519 = vpop.f32.mrf.mxu0
        %v1520 = vadd.f32 %v1431, %v1519
        %1521 = vmatmul.bf16.gmra.mxu0 %v369
        %v1522 = vpop.f32.mrf.mxu0
        %v1523 = vadd.f32 %v1434, %v1522
        %v1524 = vpop.f32.mrf.mxu0
        %v1525 = vadd.f32 %v1436, %v1524
        %1526 = vmatmul.bf16.gmra.mxu0 %v374
        %v1527 = vpop.f32.mrf.mxu0
        %v1528 = vadd.f32 %v1439, %v1527
        %v1529 = vpop.f32.mrf.mxu0
        %v1530 = vadd.f32 %v1441, %v1529
        %1531 = vmatmul.bf16.gmra.mxu0 %v379
        %v1532 = vpop.f32.mrf.mxu0
        %v1533 = vadd.f32 %v1444, %v1532
        %v1534 = vpop.f32.mrf.mxu0
        %v1535 = vadd.f32 %v1446, %v1534
        %1536 = vmatmul.bf16.gmra.mxu0 %v384
        %v1537 = vpop.f32.mrf.mxu0
        %v1538 = vadd.f32 %v1449, %v1537
        %v1539 = vpop.f32.mrf.mxu0
        %v1540 = vadd.f32 %v1451, %v1539
        %1541 = vmatmul.bf16.gmra.mxu0 %v389
        %v1542 = vpop.f32.mrf.mxu0
        %v1543 = vadd.f32 %v1454, %v1542
        %v1544 = vpop.f32.mrf.mxu0
        %v1545 = vadd.f32 %v1456, %v1544
        %1546 = vmatmul.bf16.gmra.mxu0 %v394
        %v1547 = vpop.f32.mrf.mxu0
        %v1548 = vadd.f32 %v1459, %v1547
        %v1549 = vpop.f32.mrf.mxu0
        %v1550 = vadd.f32 %v1461, %v1549
        %1551 = vmatmul.bf16.gmra.mxu0 %v399
        %v1552 = vpop.f32.mrf.mxu0
        %v1553 = vadd.f32 %v1464, %v1552
        %v1554 = vpop.f32.mrf.mxu0
        %v1555 = vadd.f32 %v1466, %v1554
        %1556 = vmatmul.bf16.gmra.mxu0 %v404
        %v1557 = vpop.f32.mrf.mxu0
        %v1558 = vadd.f32 %v1469, %v1557
        %v1559 = vpop.f32.mrf.mxu0
        %v1560 = vadd.f32 %v1471, %v1559
        %1561 = vmatmul.bf16.gmra.mxu0 %v409
        %v1562 = vpop.f32.mrf.mxu0
        %v1563 = vadd.f32 %v1474, %v1562
        %v1564 = vpop.f32.mrf.mxu0
        %v1565 = vadd.f32 %v1476, %v1564
        %1566 = vmatmul.bf16.gmra.mxu0 %v414
        %v1567 = vpop.f32.mrf.mxu0
        %v1568 = vadd.f32 %v1479, %v1567
        %v1569 = vpop.f32.mrf.mxu0
        %v1570 = vadd.f32 %v1481, %v1569
        %1571 = vmatmul.bf16.gmra.mxu0 %v419
        %v1572 = vpop.f32.mrf.mxu0
        %v1573 = vadd.f32 %v1484, %v1572
        %v1574 = vpop.f32.mrf.mxu0
        %v1575 = vadd.f32 %v1486, %v1574
        %1576 = vmatmul.bf16.gmra.mxu0 %v424
        %v1577 = vpop.f32.mrf.mxu0
        %v1578 = vadd.f32 %v1489, %v1577
        %v1579 = vpop.f32.mrf.mxu0
        %v1580 = vadd.f32 %v1491, %v1579
        %1581 = vmatmul.bf16.gmra.mxu0 %v429
        %v1582 = vpop.f32.mrf.mxu0
        %v1583 = vadd.f32 %v1494, %v1582
        %v1584 = vpop.f32.mrf.mxu0
        %v1585 = vadd.f32 %v1496, %v1584
        %1586 = vmatmul.bf16.gmra.mxu0 %v434
        %v1587 = vpop.f32.mrf.mxu0
        %v1588 = vadd.f32 %v1499, %v1587
        %v1589 = vpop.f32.mrf.mxu0
        %v1590 = vadd.f32 %v1501, %v1589
        %1591 = vmatmul.bf16.gmra.mxu0 %v439
        %v1592 = vpop.f32.mrf.mxu0
        %v1593 = vadd.f32 %v1504, %v1592
        %v1594 = vpop.f32.mrf.mxu0
        %v1595 = vadd.f32 %v1506, %v1594
        %1596 = vdwg.mxu0
        %1597 = vmatpush.bf16.msra.mxu0 %v1118
        %1598 = vmatpush.bf16.msra.mxu0 %v1115
        %1599 = vmatpush.bf16.msra.mxu0 %v1112
        %1600 = vmatpush.bf16.msra.mxu0 %v1109
        %1601 = vmatpush.bf16.msra.mxu0 %v1106
        %1602 = vmatpush.bf16.msra.mxu0 %v1103
        %1603 = vmatpush.bf16.msra.mxu0 %v1100
        %1604 = vmatpush.bf16.msra.mxu0 %v1097
        %1605 = vmatmul.bf16.gmra.mxu0 %v365
        %v1606 = vpop.f32.mrf.mxu0
        %v1607 = vadd.f32 %v1518, %v1606
        %v1608 = vpop.f32.mrf.mxu0
        %v1609 = vadd.f32 %v1520, %v1608
        %1610 = vmatmul.bf16.gmra.mxu0 %v370
        %v1611 = vpop.f32.mrf.mxu0
        %v1612 = vadd.f32 %v1523, %v1611
        %v1613 = vpop.f32.mrf.mxu0
        %v1614 = vadd.f32 %v1525, %v1613
        %1615 = vmatmul.bf16.gmra.mxu0 %v375
        %v1616 = vpop.f32.mrf.mxu0
        %v1617 = vadd.f32 %v1528, %v1616
        %v1618 = vpop.f32.mrf.mxu0
        %v1619 = vadd.f32 %v1530, %v1618
        %1620 = vmatmul.bf16.gmra.mxu0 %v380
        %v1621 = vpop.f32.mrf.mxu0
        %v1622 = vadd.f32 %v1533, %v1621
        %v1623 = vpop.f32.mrf.mxu0
        %v1624 = vadd.f32 %v1535, %v1623
        %1625 = vmatmul.bf16.gmra.mxu0 %v385
        %v1626 = vpop.f32.mrf.mxu0
        %v1627 = vadd.f32 %v1538, %v1626
        %v1628 = vpop.f32.mrf.mxu0
        %v1629 = vadd.f32 %v1540, %v1628
        %1630 = vmatmul.bf16.gmra.mxu0 %v390
        %v1631 = vpop.f32.mrf.mxu0
        %v1632 = vadd.f32 %v1543, %v1631
        %v1633 = vpop.f32.mrf.mxu0
        %v1634 = vadd.f32 %v1545, %v1633
        %1635 = vmatmul.bf16.gmra.mxu0 %v395
        %v1636 = vpop.f32.mrf.mxu0
        %v1637 = vadd.f32 %v1548, %v1636
        %v1638 = vpop.f32.mrf.mxu0
        %v1639 = vadd.f32 %v1550, %v1638
        %1640 = vmatmul.bf16.gmra.mxu0 %v400
        %v1641 = vpop.f32.mrf.mxu0
        %v1642 = vadd.f32 %v1553, %v1641
        %v1643 = vpop.f32.mrf.mxu0
        %v1644 = vadd.f32 %v1555, %v1643
        %1645 = vmatmul.bf16.gmra.mxu0 %v405
        %v1646 = vpop.f32.mrf.mxu0
        %v1647 = vadd.f32 %v1558, %v1646
        %v1648 = vpop.f32.mrf.mxu0
        %v1649 = vadd.f32 %v1560, %v1648
        %1650 = vmatmul.bf16.gmra.mxu0 %v410
        %v1651 = vpop.f32.mrf.mxu0
        %v1652 = vadd.f32 %v1563, %v1651
        %v1653 = vpop.f32.mrf.mxu0
        %v1654 = vadd.f32 %v1565, %v1653
        %1655 = vmatmul.bf16.gmra.mxu0 %v415
        %v1656 = vpop.f32.mrf.mxu0
        %v1657 = vadd.f32 %v1568, %v1656
        %v1658 = vpop.f32.mrf.mxu0
        %v1659 = vadd.f32 %v1570, %v1658
        %1660 = vmatmul.bf16.gmra.mxu0 %v420
        %v1661 = vpop.f32.mrf.mxu0
        %v1662 = vadd.f32 %v1573, %v1661
        %v1663 = vpop.f32.mrf.mxu0
        %v1664 = vadd.f32 %v1575, %v1663
        %1665 = vmatmul.bf16.gmra.mxu0 %v425
        %v1666 = vpop.f32.mrf.mxu0
        %v1667 = vadd.f32 %v1578, %v1666
        %v1668 = vpop.f32.mrf.mxu0
        %v1669 = vadd.f32 %v1580, %v1668
        %1670 = vmatmul.bf16.gmra.mxu0 %v430
        %v1671 = vpop.f32.mrf.mxu0
        %v1672 = vadd.f32 %v1583, %v1671
        %v1673 = vpop.f32.mrf.mxu0
        %v1674 = vadd.f32 %v1585, %v1673
        %1675 = vmatmul.bf16.gmra.mxu0 %v435
        %v1676 = vpop.f32.mrf.mxu0
        %v1677 = vadd.f32 %v1588, %v1676
        %v1678 = vpop.f32.mrf.mxu0
        %v1679 = vadd.f32 %v1590, %v1678
        %1680 = vmatmul.bf16.gmra.mxu0 %v440
        %v1681 = vpop.f32.mrf.mxu0
        %v1682 = vadd.f32 %v1593, %v1681
        %v1683 = vpop.f32.mrf.mxu0
        %v1684 = vadd.f32 %v1595, %v1683
        %1685 = vdwg.mxu0
        %1686 = vmatpush.bf16.msra.mxu0 %v1023
        %1687 = vmatpush.bf16.msra.mxu0 %v1020
        %1688 = vmatpush.bf16.msra.mxu0 %v1017
        %1689 = vmatpush.bf16.msra.mxu0 %v1014
        %1690 = vmatpush.bf16.msra.mxu0 %v1011
        %1691 = vmatpush.bf16.msra.mxu0 %v1008
        %1692 = vmatpush.bf16.msra.mxu0 %v1005
        %1693 = vmatpush.bf16.msra.mxu0 %v1002
        %1694 = vmatmul.bf16.gmra.mxu0 %v361
        %v1695 = vpop.f32.mrf.mxu0
        %v1696 = vadd.f32 0.0, %v1695
        %v1697 = vpop.f32.mrf.mxu0
        %v1698 = vadd.f32 0.0, %v1697
        %1699 = vmatmul.bf16.gmra.mxu0 %v366
        %v1700 = vpop.f32.mrf.mxu0
        %v1701 = vadd.f32 0.0, %v1700
        %v1702 = vpop.f32.mrf.mxu0
        %v1703 = vadd.f32 0.0, %v1702
        %1704 = vmatmul.bf16.gmra.mxu0 %v371
        %v1705 = vpop.f32.mrf.mxu0
        %v1706 = vadd.f32 0.0, %v1705
        %v1707 = vpop.f32.mrf.mxu0
        %v1708 = vadd.f32 0.0, %v1707
        %1709 = vmatmul.bf16.gmra.mxu0 %v376
        %v1710 = vpop.f32.mrf.mxu0
        %v1711 = vadd.f32 0.0, %v1710
        %v1712 = vpop.f32.mrf.mxu0
        %v1713 = vadd.f32 0.0, %v1712
        %1714 = vmatmul.bf16.gmra.mxu0 %v381
        %v1715 = vpop.f32.mrf.mxu0
        %v1716 = vadd.f32 0.0, %v1715
        %v1717 = vpop.f32.mrf.mxu0
        %v1718 = vadd.f32 0.0, %v1717
        %1719 = vmatmul.bf16.gmra.mxu0 %v386
        %v1720 = vpop.f32.mrf.mxu0
        %v1721 = vadd.f32 0.0, %v1720
        %v1722 = vpop.f32.mrf.mxu0
        %v1723 = vadd.f32 0.0, %v1722
        %1724 = vmatmul.bf16.gmra.mxu0 %v391
        %v1725 = vpop.f32.mrf.mxu0
        %v1726 = vadd.f32 0.0, %v1725
        %v1727 = vpop.f32.mrf.mxu0
        %v1728 = vadd.f32 0.0, %v1727
        %1729 = vmatmul.bf16.gmra.mxu0 %v396
        %v1730 = vpop.f32.mrf.mxu0
        %v1731 = vadd.f32 0.0, %v1730
        %v1732 = vpop.f32.mrf.mxu0
        %v1733 = vadd.f32 0.0, %v1732
        %1734 = vmatmul.bf16.gmra.mxu0 %v401
        %v1735 = vpop.f32.mrf.mxu0
        %v1736 = vadd.f32 0.0, %v1735
        %v1737 = vpop.f32.mrf.mxu0
        %v1738 = vadd.f32 0.0, %v1737
        %1739 = vmatmul.bf16.gmra.mxu0 %v406
        %v1740 = vpop.f32.mrf.mxu0
        %v1741 = vadd.f32 0.0, %v1740
        %v1742 = vpop.f32.mrf.mxu0
        %v1743 = vadd.f32 0.0, %v1742
        %1744 = vmatmul.bf16.gmra.mxu0 %v411
        %v1745 = vpop.f32.mrf.mxu0
        %v1746 = vadd.f32 0.0, %v1745
        %v1747 = vpop.f32.mrf.mxu0
        %v1748 = vadd.f32 0.0, %v1747
        %1749 = vmatmul.bf16.gmra.mxu0 %v416
        %v1750 = vpop.f32.mrf.mxu0
        %v1751 = vadd.f32 0.0, %v1750
        %v1752 = vpop.f32.mrf.mxu0
        %v1753 = vadd.f32 0.0, %v1752
        %1754 = vmatmul.bf16.gmra.mxu0 %v421
        %v1755 = vpop.f32.mrf.mxu0
        %v1756 = vadd.f32 0.0, %v1755
        %v1757 = vpop.f32.mrf.mxu0
        %v1758 = vadd.f32 0.0, %v1757
        %1759 = vmatmul.bf16.gmra.mxu0 %v426
        %v1760 = vpop.f32.mrf.mxu0
        %v1761 = vadd.f32 0.0, %v1760
        %v1762 = vpop.f32.mrf.mxu0
        %v1763 = vadd.f32 0.0, %v1762
        %1764 = vmatmul.bf16.gmra.mxu0 %v431
        %v1765 = vpop.f32.mrf.mxu0
        %v1766 = vadd.f32 0.0, %v1765
        %v1767 = vpop.f32.mrf.mxu0
        %v1768 = vadd.f32 0.0, %v1767
        %1769 = vmatmul.bf16.gmra.mxu0 %v436
        %v1770 = vpop.f32.mrf.mxu0
        %v1771 = vadd.f32 0.0, %v1770
        %v1772 = vpop.f32.mrf.mxu0
        %v1773 = vadd.f32 0.0, %v1772
        %1774 = vdwg.mxu0
        %1775 = vmatpush.bf16.msra.mxu0 %v1047
        %1776 = vmatpush.bf16.msra.mxu0 %v1044
        %1777 = vmatpush.bf16.msra.mxu0 %v1041
        %1778 = vmatpush.bf16.msra.mxu0 %v1038
        %1779 = vmatpush.bf16.msra.mxu0 %v1035
        %1780 = vmatpush.bf16.msra.mxu0 %v1032
        %1781 = vmatpush.bf16.msra.mxu0 %v1029
        %1782 = vmatpush.bf16.msra.mxu0 %v1026
        %1783 = vmatmul.bf16.gmra.mxu0 %v362
        %v1784 = vpop.f32.mrf.mxu0
        %v1785 = vadd.f32 %v1696, %v1784
        %v1786 = vpop.f32.mrf.mxu0
        %v1787 = vadd.f32 %v1698, %v1786
        %1788 = vmatmul.bf16.gmra.mxu0 %v367
        %v1789 = vpop.f32.mrf.mxu0
        %v1790 = vadd.f32 %v1701, %v1789
        %v1791 = vpop.f32.mrf.mxu0
        %v1792 = vadd.f32 %v1703, %v1791
        %1793 = vmatmul.bf16.gmra.mxu0 %v372
        %v1794 = vpop.f32.mrf.mxu0
        %v1795 = vadd.f32 %v1706, %v1794
        %v1796 = vpop.f32.mrf.mxu0
        %v1797 = vadd.f32 %v1708, %v1796
        %1798 = vmatmul.bf16.gmra.mxu0 %v377
        %v1799 = vpop.f32.mrf.mxu0
        %v1800 = vadd.f32 %v1711, %v1799
        %v1801 = vpop.f32.mrf.mxu0
        %v1802 = vadd.f32 %v1713, %v1801
        %1803 = vmatmul.bf16.gmra.mxu0 %v382
        %v1804 = vpop.f32.mrf.mxu0
        %v1805 = vadd.f32 %v1716, %v1804
        %v1806 = vpop.f32.mrf.mxu0
        %v1807 = vadd.f32 %v1718, %v1806
        %1808 = vmatmul.bf16.gmra.mxu0 %v387
        %v1809 = vpop.f32.mrf.mxu0
        %v1810 = vadd.f32 %v1721, %v1809
        %v1811 = vpop.f32.mrf.mxu0
        %v1812 = vadd.f32 %v1723, %v1811
        %1813 = vmatmul.bf16.gmra.mxu0 %v392
        %v1814 = vpop.f32.mrf.mxu0
        %v1815 = vadd.f32 %v1726, %v1814
        %v1816 = vpop.f32.mrf.mxu0
        %v1817 = vadd.f32 %v1728, %v1816
        %1818 = vmatmul.bf16.gmra.mxu0 %v397
        %v1819 = vpop.f32.mrf.mxu0
        %v1820 = vadd.f32 %v1731, %v1819
        %v1821 = vpop.f32.mrf.mxu0
        %v1822 = vadd.f32 %v1733, %v1821
        %1823 = vmatmul.bf16.gmra.mxu0 %v402
        %v1824 = vpop.f32.mrf.mxu0
        %v1825 = vadd.f32 %v1736, %v1824
        %v1826 = vpop.f32.mrf.mxu0
        %v1827 = vadd.f32 %v1738, %v1826
        %1828 = vmatmul.bf16.gmra.mxu0 %v407
        %v1829 = vpop.f32.mrf.mxu0
        %v1830 = vadd.f32 %v1741, %v1829
        %v1831 = vpop.f32.mrf.mxu0
        %v1832 = vadd.f32 %v1743, %v1831
        %1833 = vmatmul.bf16.gmra.mxu0 %v412
        %v1834 = vpop.f32.mrf.mxu0
        %v1835 = vadd.f32 %v1746, %v1834
        %v1836 = vpop.f32.mrf.mxu0
        %v1837 = vadd.f32 %v1748, %v1836
        %1838 = vmatmul.bf16.gmra.mxu0 %v417
        %v1839 = vpop.f32.mrf.mxu0
        %v1840 = vadd.f32 %v1751, %v1839
        %v1841 = vpop.f32.mrf.mxu0
        %v1842 = vadd.f32 %v1753, %v1841
        %1843 = vmatmul.bf16.gmra.mxu0 %v422
        %v1844 = vpop.f32.mrf.mxu0
        %v1845 = vadd.f32 %v1756, %v1844
        %v1846 = vpop.f32.mrf.mxu0
        %v1847 = vadd.f32 %v1758, %v1846
        %1848 = vmatmul.bf16.gmra.mxu0 %v427
        %v1849 = vpop.f32.mrf.mxu0
        %v1850 = vadd.f32 %v1761, %v1849
        %v1851 = vpop.f32.mrf.mxu0
        %v1852 = vadd.f32 %v1763, %v1851
        %1853 = vmatmul.bf16.gmra.mxu0 %v432
        %v1854 = vpop.f32.mrf.mxu0
        %v1855 = vadd.f32 %v1766, %v1854
        %v1856 = vpop.f32.mrf.mxu0
        %v1857 = vadd.f32 %v1768, %v1856
        %1858 = vmatmul.bf16.gmra.mxu0 %v437
        %v1859 = vpop.f32.mrf.mxu0
        %v1860 = vadd.f32 %v1771, %v1859
        %v1861 = vpop.f32.mrf.mxu0
        %v1862 = vadd.f32 %v1773, %v1861
        %1863 = vdwg.mxu0
        %1864 = vmatpush.bf16.msra.mxu0 %v1071
        %1865 = vmatpush.bf16.msra.mxu0 %v1068
        %1866 = vmatpush.bf16.msra.mxu0 %v1065
        %1867 = vmatpush.bf16.msra.mxu0 %v1062
        %1868 = vmatpush.bf16.msra.mxu0 %v1059
        %1869 = vmatpush.bf16.msra.mxu0 %v1056
        %1870 = vmatpush.bf16.msra.mxu0 %v1053
        %1871 = vmatpush.bf16.msra.mxu0 %v1050
        %1872 = vmatmul.bf16.gmra.mxu0 %v363
        %v1873 = vpop.f32.mrf.mxu0
        %v1874 = vadd.f32 %v1785, %v1873
        %v1875 = vpop.f32.mrf.mxu0
        %v1876 = vadd.f32 %v1787, %v1875
        %1877 = vmatmul.bf16.gmra.mxu0 %v368
        %v1878 = vpop.f32.mrf.mxu0
        %v1879 = vadd.f32 %v1790, %v1878
        %v1880 = vpop.f32.mrf.mxu0
        %v1881 = vadd.f32 %v1792, %v1880
        %1882 = vmatmul.bf16.gmra.mxu0 %v373
        %v1883 = vpop.f32.mrf.mxu0
        %v1884 = vadd.f32 %v1795, %v1883
        %v1885 = vpop.f32.mrf.mxu0
        %v1886 = vadd.f32 %v1797, %v1885
        %1887 = vmatmul.bf16.gmra.mxu0 %v378
        %v1888 = vpop.f32.mrf.mxu0
        %v1889 = vadd.f32 %v1800, %v1888
        %v1890 = vpop.f32.mrf.mxu0
        %v1891 = vadd.f32 %v1802, %v1890
        %1892 = vmatmul.bf16.gmra.mxu0 %v383
        %v1893 = vpop.f32.mrf.mxu0
        %v1894 = vadd.f32 %v1805, %v1893
        %v1895 = vpop.f32.mrf.mxu0
        %v1896 = vadd.f32 %v1807, %v1895
        %1897 = vmatmul.bf16.gmra.mxu0 %v388
        %v1898 = vpop.f32.mrf.mxu0
        %v1899 = vadd.f32 %v1810, %v1898
        %v1900 = vpop.f32.mrf.mxu0
        %v1901 = vadd.f32 %v1812, %v1900
        %1902 = vmatmul.bf16.gmra.mxu0 %v393
        %v1903 = vpop.f32.mrf.mxu0
        %v1904 = vadd.f32 %v1815, %v1903
        %v1905 = vpop.f32.mrf.mxu0
        %v1906 = vadd.f32 %v1817, %v1905
        %1907 = vmatmul.bf16.gmra.mxu0 %v398
        %v1908 = vpop.f32.mrf.mxu0
        %v1909 = vadd.f32 %v1820, %v1908
        %v1910 = vpop.f32.mrf.mxu0
        %v1911 = vadd.f32 %v1822, %v1910
        %1912 = vmatmul.bf16.gmra.mxu0 %v403
        %v1913 = vpop.f32.mrf.mxu0
        %v1914 = vadd.f32 %v1825, %v1913
        %v1915 = vpop.f32.mrf.mxu0
        %v1916 = vadd.f32 %v1827, %v1915
        %1917 = vmatmul.bf16.gmra.mxu0 %v408
        %v1918 = vpop.f32.mrf.mxu0
        %v1919 = vadd.f32 %v1830, %v1918
        %v1920 = vpop.f32.mrf.mxu0
        %v1921 = vadd.f32 %v1832, %v1920
        %1922 = vmatmul.bf16.gmra.mxu0 %v413
        %v1923 = vpop.f32.mrf.mxu0
        %v1924 = vadd.f32 %v1835, %v1923
        %v1925 = vpop.f32.mrf.mxu0
        %v1926 = vadd.f32 %v1837, %v1925
        %1927 = vmatmul.bf16.gmra.mxu0 %v418
        %v1928 = vpop.f32.mrf.mxu0
        %v1929 = vadd.f32 %v1840, %v1928
        %v1930 = vpop.f32.mrf.mxu0
        %v1931 = vadd.f32 %v1842, %v1930
        %1932 = vmatmul.bf16.gmra.mxu0 %v423
        %v1933 = vpop.f32.mrf.mxu0
        %v1934 = vadd.f32 %v1845, %v1933
        %v1935 = vpop.f32.mrf.mxu0
        %v1936 = vadd.f32 %v1847, %v1935
        %1937 = vmatmul.bf16.gmra.mxu0 %v428
        %v1938 = vpop.f32.mrf.mxu0
        %v1939 = vadd.f32 %v1850, %v1938
        %v1940 = vpop.f32.mrf.mxu0
        %v1941 = vadd.f32 %v1852, %v1940
        %1942 = vmatmul.bf16.gmra.mxu0 %v433
        %v1943 = vpop.f32.mrf.mxu0
        %v1944 = vadd.f32 %v1855, %v1943
        %v1945 = vpop.f32.mrf.mxu0
        %v1946 = vadd.f32 %v1857, %v1945
        %1947 = vmatmul.bf16.gmra.mxu0 %v438
        %v1948 = vpop.f32.mrf.mxu0
        %v1949 = vadd.f32 %v1860, %v1948
        %v1950 = vpop.f32.mrf.mxu0
        %v1951 = vadd.f32 %v1862, %v1950
        %1952 = vdwg.mxu0
        %1953 = vmatpush.bf16.msra.mxu0 %v1095
        %1954 = vmatpush.bf16.msra.mxu0 %v1092
        %1955 = vmatpush.bf16.msra.mxu0 %v1089
        %1956 = vmatpush.bf16.msra.mxu0 %v1086
        %1957 = vmatpush.bf16.msra.mxu0 %v1083
        %1958 = vmatpush.bf16.msra.mxu0 %v1080
        %1959 = vmatpush.bf16.msra.mxu0 %v1077
        %1960 = vmatpush.bf16.msra.mxu0 %v1074
        %1961 = vmatmul.bf16.gmra.mxu0 %v364
        %v1962 = vpop.f32.mrf.mxu0
        %v1963 = vadd.f32 %v1874, %v1962
        %v1964 = vpop.f32.mrf.mxu0
        %v1965 = vadd.f32 %v1876, %v1964
        %1966 = vmatmul.bf16.gmra.mxu0 %v369
        %v1967 = vpop.f32.mrf.mxu0
        %v1968 = vadd.f32 %v1879, %v1967
        %v1969 = vpop.f32.mrf.mxu0
        %v1970 = vadd.f32 %v1881, %v1969
        %1971 = vmatmul.bf16.gmra.mxu0 %v374
        %v1972 = vpop.f32.mrf.mxu0
        %v1973 = vadd.f32 %v1884, %v1972
        %v1974 = vpop.f32.mrf.mxu0
        %v1975 = vadd.f32 %v1886, %v1974
        %1976 = vmatmul.bf16.gmra.mxu0 %v379
        %v1977 = vpop.f32.mrf.mxu0
        %v1978 = vadd.f32 %v1889, %v1977
        %v1979 = vpop.f32.mrf.mxu0
        %v1980 = vadd.f32 %v1891, %v1979
        %1981 = vmatmul.bf16.gmra.mxu0 %v384
        %v1982 = vpop.f32.mrf.mxu0
        %v1983 = vadd.f32 %v1894, %v1982
        %v1984 = vpop.f32.mrf.mxu0
        %v1985 = vadd.f32 %v1896, %v1984
        %1986 = vmatmul.bf16.gmra.mxu0 %v389
        %v1987 = vpop.f32.mrf.mxu0
        %v1988 = vadd.f32 %v1899, %v1987
        %v1989 = vpop.f32.mrf.mxu0
        %v1990 = vadd.f32 %v1901, %v1989
        %1991 = vmatmul.bf16.gmra.mxu0 %v394
        %v1992 = vpop.f32.mrf.mxu0
        %v1993 = vadd.f32 %v1904, %v1992
        %v1994 = vpop.f32.mrf.mxu0
        %v1995 = vadd.f32 %v1906, %v1994
        %1996 = vmatmul.bf16.gmra.mxu0 %v399
        %v1997 = vpop.f32.mrf.mxu0
        %v1998 = vadd.f32 %v1909, %v1997
        %v1999 = vpop.f32.mrf.mxu0
        %v2000 = vadd.f32 %v1911, %v1999
        %2001 = vmatmul.bf16.gmra.mxu0 %v404
        %v2002 = vpop.f32.mrf.mxu0
        %v2003 = vadd.f32 %v1914, %v2002
        %v2004 = vpop.f32.mrf.mxu0
        %v2005 = vadd.f32 %v1916, %v2004
        %2006 = vmatmul.bf16.gmra.mxu0 %v409
        %v2007 = vpop.f32.mrf.mxu0
        %v2008 = vadd.f32 %v1919, %v2007
        %v2009 = vpop.f32.mrf.mxu0
        %v2010 = vadd.f32 %v1921, %v2009
        %2011 = vmatmul.bf16.gmra.mxu0 %v414
        %v2012 = vpop.f32.mrf.mxu0
        %v2013 = vadd.f32 %v1924, %v2012
        %v2014 = vpop.f32.mrf.mxu0
        %v2015 = vadd.f32 %v1926, %v2014
        %2016 = vmatmul.bf16.gmra.mxu0 %v419
        %v2017 = vpop.f32.mrf.mxu0
        %v2018 = vadd.f32 %v1929, %v2017
        %v2019 = vpop.f32.mrf.mxu0
        %v2020 = vadd.f32 %v1931, %v2019
        %2021 = vmatmul.bf16.gmra.mxu0 %v424
        %v2022 = vpop.f32.mrf.mxu0
        %v2023 = vadd.f32 %v1934, %v2022
        %v2024 = vpop.f32.mrf.mxu0
        %v2025 = vadd.f32 %v1936, %v2024
        %2026 = vmatmul.bf16.gmra.mxu0 %v429
        %v2027 = vpop.f32.mrf.mxu0
        %v2028 = vadd.f32 %v1939, %v2027
        %v2029 = vpop.f32.mrf.mxu0
        %v2030 = vadd.f32 %v1941, %v2029
        %2031 = vmatmul.bf16.gmra.mxu0 %v434
        %v2032 = vpop.f32.mrf.mxu0
        %v2033 = vadd.f32 %v1944, %v2032
        %v2034 = vpop.f32.mrf.mxu0
        %v2035 = vadd.f32 %v1946, %v2034
        %2036 = vmatmul.bf16.gmra.mxu0 %v439
        %v2037 = vpop.f32.mrf.mxu0
        %v2038 = vadd.f32 %v1949, %v2037
        %v2039 = vpop.f32.mrf.mxu0
        %v2040 = vadd.f32 %v1951, %v2039
        %2041 = vdwg.mxu0
        %2042 = vmatpush.bf16.msra.mxu0 %v1119
        %2043 = vmatpush.bf16.msra.mxu0 %v1116
        %2044 = vmatpush.bf16.msra.mxu0 %v1113
        %2045 = vmatpush.bf16.msra.mxu0 %v1110
        %2046 = vmatpush.bf16.msra.mxu0 %v1107
        %2047 = vmatpush.bf16.msra.mxu0 %v1104
        %2048 = vmatpush.bf16.msra.mxu0 %v1101
        %2049 = vmatpush.bf16.msra.mxu0 %v1098
        %2050 = vmatmul.bf16.gmra.mxu0 %v365
        %v2051 = vpop.f32.mrf.mxu0
        %v2052 = vadd.f32 %v1963, %v2051
        %v2053 = vpop.f32.mrf.mxu0
        %v2054 = vadd.f32 %v1965, %v2053
        %2055 = vmatmul.bf16.gmra.mxu0 %v370
        %v2056 = vpop.f32.mrf.mxu0
        %v2057 = vadd.f32 %v1968, %v2056
        %v2058 = vpop.f32.mrf.mxu0
        %v2059 = vadd.f32 %v1970, %v2058
        %2060 = vmatmul.bf16.gmra.mxu0 %v375
        %v2061 = vpop.f32.mrf.mxu0
        %v2062 = vadd.f32 %v1973, %v2061
        %v2063 = vpop.f32.mrf.mxu0
        %v2064 = vadd.f32 %v1975, %v2063
        %2065 = vmatmul.bf16.gmra.mxu0 %v380
        %v2066 = vpop.f32.mrf.mxu0
        %v2067 = vadd.f32 %v1978, %v2066
        %v2068 = vpop.f32.mrf.mxu0
        %v2069 = vadd.f32 %v1980, %v2068
        %2070 = vmatmul.bf16.gmra.mxu0 %v385
        %v2071 = vpop.f32.mrf.mxu0
        %v2072 = vadd.f32 %v1983, %v2071
        %v2073 = vpop.f32.mrf.mxu0
        %v2074 = vadd.f32 %v1985, %v2073
        %2075 = vmatmul.bf16.gmra.mxu0 %v390
        %v2076 = vpop.f32.mrf.mxu0
        %v2077 = vadd.f32 %v1988, %v2076
        %v2078 = vpop.f32.mrf.mxu0
        %v2079 = vadd.f32 %v1990, %v2078
        %2080 = vmatmul.bf16.gmra.mxu0 %v395
        %v2081 = vpop.f32.mrf.mxu0
        %v2082 = vadd.f32 %v1993, %v2081
        %v2083 = vpop.f32.mrf.mxu0
        %v2084 = vadd.f32 %v1995, %v2083
        %2085 = vmatmul.bf16.gmra.mxu0 %v400
        %v2086 = vpop.f32.mrf.mxu0
        %v2087 = vadd.f32 %v1998, %v2086
        %v2088 = vpop.f32.mrf.mxu0
        %v2089 = vadd.f32 %v2000, %v2088
        %2090 = vmatmul.bf16.gmra.mxu0 %v405
        %v2091 = vpop.f32.mrf.mxu0
        %v2092 = vadd.f32 %v2003, %v2091
        %v2093 = vpop.f32.mrf.mxu0
        %v2094 = vadd.f32 %v2005, %v2093
        %2095 = vmatmul.bf16.gmra.mxu0 %v410
        %v2096 = vpop.f32.mrf.mxu0
        %v2097 = vadd.f32 %v2008, %v2096
        %v2098 = vpop.f32.mrf.mxu0
        %v2099 = vadd.f32 %v2010, %v2098
        %2100 = vmatmul.bf16.gmra.mxu0 %v415
        %v2101 = vpop.f32.mrf.mxu0
        %v2102 = vadd.f32 %v2013, %v2101
        %v2103 = vpop.f32.mrf.mxu0
        %v2104 = vadd.f32 %v2015, %v2103
        %2105 = vmatmul.bf16.gmra.mxu0 %v420
        %v2106 = vpop.f32.mrf.mxu0
        %v2107 = vadd.f32 %v2018, %v2106
        %v2108 = vpop.f32.mrf.mxu0
        %v2109 = vadd.f32 %v2020, %v2108
        %2110 = vmatmul.bf16.gmra.mxu0 %v425
        %v2111 = vpop.f32.mrf.mxu0
        %v2112 = vadd.f32 %v2023, %v2111
        %v2113 = vpop.f32.mrf.mxu0
        %v2114 = vadd.f32 %v2025, %v2113
        %2115 = vmatmul.bf16.gmra.mxu0 %v430
        %v2116 = vpop.f32.mrf.mxu0
        %v2117 = vadd.f32 %v2028, %v2116
        %v2118 = vpop.f32.mrf.mxu0
        %v2119 = vadd.f32 %v2030, %v2118
        %2120 = vmatmul.bf16.gmra.mxu0 %v435
        %v2121 = vpop.f32.mrf.mxu0
        %v2122 = vadd.f32 %v2033, %v2121
        %v2123 = vpop.f32.mrf.mxu0
        %v2124 = vadd.f32 %v2035, %v2123
        %2125 = vmatmul.bf16.gmra.mxu0 %v440
        %v2126 = vpop.f32.mrf.mxu0
        %v2127 = vadd.f32 %v2038, %v2126
        %v2128 = vpop.f32.mrf.mxu0
        %v2129 = vadd.f32 %v2040, %v2128
        %2130 = vdwg.mxu0
        %2131 = vmatpush.bf16.msra.mxu0 %v1024
        %2132 = vmatpush.bf16.msra.mxu0 %v1021
        %2133 = vmatpush.bf16.msra.mxu0 %v1018
        %2134 = vmatpush.bf16.msra.mxu0 %v1015
        %2135 = vmatpush.bf16.msra.mxu0 %v1012
        %2136 = vmatpush.bf16.msra.mxu0 %v1009
        %2137 = vmatpush.bf16.msra.mxu0 %v1006
        %2138 = vmatpush.bf16.msra.mxu0 %v1003
        %2139 = vmatmul.bf16.gmra.mxu0 %v361
        %v2140 = vpop.f32.mrf.mxu0
        %v2141 = vadd.f32 0.0, %v2140
        %v2142 = vpop.f32.mrf.mxu0
        %v2143 = vadd.f32 0.0, %v2142
        %2144 = vmatmul.bf16.gmra.mxu0 %v366
        %v2145 = vpop.f32.mrf.mxu0
        %v2146 = vadd.f32 0.0, %v2145
        %v2147 = vpop.f32.mrf.mxu0
        %v2148 = vadd.f32 0.0, %v2147
        %2149 = vmatmul.bf16.gmra.mxu0 %v371
        %v2150 = vpop.f32.mrf.mxu0
        %v2151 = vadd.f32 0.0, %v2150
        %v2152 = vpop.f32.mrf.mxu0
        %v2153 = vadd.f32 0.0, %v2152
        %2154 = vmatmul.bf16.gmra.mxu0 %v376
        %v2155 = vpop.f32.mrf.mxu0
        %v2156 = vadd.f32 0.0, %v2155
        %v2157 = vpop.f32.mrf.mxu0
        %v2158 = vadd.f32 0.0, %v2157
        %2159 = vmatmul.bf16.gmra.mxu0 %v381
        %v2160 = vpop.f32.mrf.mxu0
        %v2161 = vadd.f32 0.0, %v2160
        %v2162 = vpop.f32.mrf.mxu0
        %v2163 = vadd.f32 0.0, %v2162
        %2164 = vmatmul.bf16.gmra.mxu0 %v386
        %v2165 = vpop.f32.mrf.mxu0
        %v2166 = vadd.f32 0.0, %v2165
        %v2167 = vpop.f32.mrf.mxu0
        %v2168 = vadd.f32 0.0, %v2167
        %2169 = vmatmul.bf16.gmra.mxu0 %v391
        %v2170 = vpop.f32.mrf.mxu0
        %v2171 = vadd.f32 0.0, %v2170
        %v2172 = vpop.f32.mrf.mxu0
        %v2173 = vadd.f32 0.0, %v2172
        %2174 = vmatmul.bf16.gmra.mxu0 %v396
        %v2175 = vpop.f32.mrf.mxu0
        %v2176 = vadd.f32 0.0, %v2175
        %v2177 = vpop.f32.mrf.mxu0
        %v2178 = vadd.f32 0.0, %v2177
        %2179 = vmatmul.bf16.gmra.mxu0 %v401
        %v2180 = vpop.f32.mrf.mxu0
        %v2181 = vadd.f32 0.0, %v2180
        %v2182 = vpop.f32.mrf.mxu0
        %v2183 = vadd.f32 0.0, %v2182
        %2184 = vmatmul.bf16.gmra.mxu0 %v406
        %v2185 = vpop.f32.mrf.mxu0
        %v2186 = vadd.f32 0.0, %v2185
        %v2187 = vpop.f32.mrf.mxu0
        %v2188 = vadd.f32 0.0, %v2187
        %2189 = vmatmul.bf16.gmra.mxu0 %v411
        %v2190 = vpop.f32.mrf.mxu0
        %v2191 = vadd.f32 0.0, %v2190
        %v2192 = vpop.f32.mrf.mxu0
        %v2193 = vadd.f32 0.0, %v2192
        %2194 = vmatmul.bf16.gmra.mxu0 %v416
        %v2195 = vpop.f32.mrf.mxu0
        %v2196 = vadd.f32 0.0, %v2195
        %v2197 = vpop.f32.mrf.mxu0
        %v2198 = vadd.f32 0.0, %v2197
        %2199 = vmatmul.bf16.gmra.mxu0 %v421
        %v2200 = vpop.f32.mrf.mxu0
        %v2201 = vadd.f32 0.0, %v2200
        %v2202 = vpop.f32.mrf.mxu0
        %v2203 = vadd.f32 0.0, %v2202
        %2204 = vmatmul.bf16.gmra.mxu0 %v426
        %v2205 = vpop.f32.mrf.mxu0
        %v2206 = vadd.f32 0.0, %v2205
        %v2207 = vpop.f32.mrf.mxu0
        %v2208 = vadd.f32 0.0, %v2207
        %2209 = vmatmul.bf16.gmra.mxu0 %v431
        %v2210 = vpop.f32.mrf.mxu0
        %v2211 = vadd.f32 0.0, %v2210
        %v2212 = vpop.f32.mrf.mxu0
        %v2213 = vadd.f32 0.0, %v2212
        %2214 = vmatmul.bf16.gmra.mxu0 %v436
        %v2215 = vpop.f32.mrf.mxu0
        %v2216 = vadd.f32 0.0, %v2215
        %v2217 = vpop.f32.mrf.mxu0
        %v2218 = vadd.f32 0.0, %v2217
        %2219 = vdwg.mxu0
        %2220 = vmatpush.bf16.msra.mxu0 %v1048
        %2221 = vmatpush.bf16.msra.mxu0 %v1045
        %2222 = vmatpush.bf16.msra.mxu0 %v1042
        %2223 = vmatpush.bf16.msra.mxu0 %v1039
        %2224 = vmatpush.bf16.msra.mxu0 %v1036
        %2225 = vmatpush.bf16.msra.mxu0 %v1033
        %2226 = vmatpush.bf16.msra.mxu0 %v1030
        %2227 = vmatpush.bf16.msra.mxu0 %v1027
        %2228 = vmatmul.bf16.gmra.mxu0 %v362
        %v2229 = vpop.f32.mrf.mxu0
        %v2230 = vadd.f32 %v2141, %v2229
        %v2231 = vpop.f32.mrf.mxu0
        %v2232 = vadd.f32 %v2143, %v2231
        %2233 = vmatmul.bf16.gmra.mxu0 %v367
        %v2234 = vpop.f32.mrf.mxu0
        %v2235 = vadd.f32 %v2146, %v2234
        %v2236 = vpop.f32.mrf.mxu0
        %v2237 = vadd.f32 %v2148, %v2236
        %2238 = vmatmul.bf16.gmra.mxu0 %v372
        %v2239 = vpop.f32.mrf.mxu0
        %v2240 = vadd.f32 %v2151, %v2239
        %v2241 = vpop.f32.mrf.mxu0
        %v2242 = vadd.f32 %v2153, %v2241
        %2243 = vmatmul.bf16.gmra.mxu0 %v377
        %v2244 = vpop.f32.mrf.mxu0
        %v2245 = vadd.f32 %v2156, %v2244
        %v2246 = vpop.f32.mrf.mxu0
        %v2247 = vadd.f32 %v2158, %v2246
        %2248 = vmatmul.bf16.gmra.mxu0 %v382
        %v2249 = vpop.f32.mrf.mxu0
        %v2250 = vadd.f32 %v2161, %v2249
        %v2251 = vpop.f32.mrf.mxu0
        %v2252 = vadd.f32 %v2163, %v2251
        %2253 = vmatmul.bf16.gmra.mxu0 %v387
        %v2254 = vpop.f32.mrf.mxu0
        %v2255 = vadd.f32 %v2166, %v2254
        %v2256 = vpop.f32.mrf.mxu0
        %v2257 = vadd.f32 %v2168, %v2256
        %2258 = vmatmul.bf16.gmra.mxu0 %v392
        %v2259 = vpop.f32.mrf.mxu0
        %v2260 = vadd.f32 %v2171, %v2259
        %v2261 = vpop.f32.mrf.mxu0
        %v2262 = vadd.f32 %v2173, %v2261
        %2263 = vmatmul.bf16.gmra.mxu0 %v397
        %v2264 = vpop.f32.mrf.mxu0
        %v2265 = vadd.f32 %v2176, %v2264
        %v2266 = vpop.f32.mrf.mxu0
        %v2267 = vadd.f32 %v2178, %v2266
        %2268 = vmatmul.bf16.gmra.mxu0 %v402
        %v2269 = vpop.f32.mrf.mxu0
        %v2270 = vadd.f32 %v2181, %v2269
        %v2271 = vpop.f32.mrf.mxu0
        %v2272 = vadd.f32 %v2183, %v2271
        %2273 = vmatmul.bf16.gmra.mxu0 %v407
        %v2274 = vpop.f32.mrf.mxu0
        %v2275 = vadd.f32 %v2186, %v2274
        %v2276 = vpop.f32.mrf.mxu0
        %v2277 = vadd.f32 %v2188, %v2276
        %2278 = vmatmul.bf16.gmra.mxu0 %v412
        %v2279 = vpop.f32.mrf.mxu0
        %v2280 = vadd.f32 %v2191, %v2279
        %v2281 = vpop.f32.mrf.mxu0
        %v2282 = vadd.f32 %v2193, %v2281
        %2283 = vmatmul.bf16.gmra.mxu0 %v417
        %v2284 = vpop.f32.mrf.mxu0
        %v2285 = vadd.f32 %v2196, %v2284
        %v2286 = vpop.f32.mrf.mxu0
        %v2287 = vadd.f32 %v2198, %v2286
        %2288 = vmatmul.bf16.gmra.mxu0 %v422
        %v2289 = vpop.f32.mrf.mxu0
        %v2290 = vadd.f32 %v2201, %v2289
        %v2291 = vpop.f32.mrf.mxu0
        %v2292 = vadd.f32 %v2203, %v2291
        %2293 = vmatmul.bf16.gmra.mxu0 %v427
        %v2294 = vpop.f32.mrf.mxu0
        %v2295 = vadd.f32 %v2206, %v2294
        %v2296 = vpop.f32.mrf.mxu0
        %v2297 = vadd.f32 %v2208, %v2296
        %2298 = vmatmul.bf16.gmra.mxu0 %v432
        %v2299 = vpop.f32.mrf.mxu0
        %v2300 = vadd.f32 %v2211, %v2299
        %v2301 = vpop.f32.mrf.mxu0
        %v2302 = vadd.f32 %v2213, %v2301
        %2303 = vmatmul.bf16.gmra.mxu0 %v437
        %v2304 = vpop.f32.mrf.mxu0
        %v2305 = vadd.f32 %v2216, %v2304
        %v2306 = vpop.f32.mrf.mxu0
        %v2307 = vadd.f32 %v2218, %v2306
        %2308 = vdwg.mxu0
        %2309 = vmatpush.bf16.msra.mxu0 %v1072
        %2310 = vmatpush.bf16.msra.mxu0 %v1069
        %2311 = vmatpush.bf16.msra.mxu0 %v1066
        %2312 = vmatpush.bf16.msra.mxu0 %v1063
        %2313 = vmatpush.bf16.msra.mxu0 %v1060
        %2314 = vmatpush.bf16.msra.mxu0 %v1057
        %2315 = vmatpush.bf16.msra.mxu0 %v1054
        %2316 = vmatpush.bf16.msra.mxu0 %v1051
        %2317 = vmatmul.bf16.gmra.mxu0 %v363
        %v2318 = vpop.f32.mrf.mxu0
        %v2319 = vadd.f32 %v2230, %v2318
        %v2320 = vpop.f32.mrf.mxu0
        %v2321 = vadd.f32 %v2232, %v2320
        %2322 = vmatmul.bf16.gmra.mxu0 %v368
        %v2323 = vpop.f32.mrf.mxu0
        %v2324 = vadd.f32 %v2235, %v2323
        %v2325 = vpop.f32.mrf.mxu0
        %v2326 = vadd.f32 %v2237, %v2325
        %2327 = vmatmul.bf16.gmra.mxu0 %v373
        %v2328 = vpop.f32.mrf.mxu0
        %v2329 = vadd.f32 %v2240, %v2328
        %v2330 = vpop.f32.mrf.mxu0
        %v2331 = vadd.f32 %v2242, %v2330
        %2332 = vmatmul.bf16.gmra.mxu0 %v378
        %v2333 = vpop.f32.mrf.mxu0
        %v2334 = vadd.f32 %v2245, %v2333
        %v2335 = vpop.f32.mrf.mxu0
        %v2336 = vadd.f32 %v2247, %v2335
        %2337 = vmatmul.bf16.gmra.mxu0 %v383
        %v2338 = vpop.f32.mrf.mxu0
        %v2339 = vadd.f32 %v2250, %v2338
        %v2340 = vpop.f32.mrf.mxu0
        %v2341 = vadd.f32 %v2252, %v2340
        %2342 = vmatmul.bf16.gmra.mxu0 %v388
        %v2343 = vpop.f32.mrf.mxu0
        %v2344 = vadd.f32 %v2255, %v2343
        %v2345 = vpop.f32.mrf.mxu0
        %v2346 = vadd.f32 %v2257, %v2345
        %2347 = vmatmul.bf16.gmra.mxu0 %v393
        %v2348 = vpop.f32.mrf.mxu0
        %v2349 = vadd.f32 %v2260, %v2348
        %v2350 = vpop.f32.mrf.mxu0
        %v2351 = vadd.f32 %v2262, %v2350
        %2352 = vmatmul.bf16.gmra.mxu0 %v398
        %v2353 = vpop.f32.mrf.mxu0
        %v2354 = vadd.f32 %v2265, %v2353
        %v2355 = vpop.f32.mrf.mxu0
        %v2356 = vadd.f32 %v2267, %v2355
        %2357 = vmatmul.bf16.gmra.mxu0 %v403
        %v2358 = vpop.f32.mrf.mxu0
        %v2359 = vadd.f32 %v2270, %v2358
        %v2360 = vpop.f32.mrf.mxu0
        %v2361 = vadd.f32 %v2272, %v2360
        %2362 = vmatmul.bf16.gmra.mxu0 %v408
        %v2363 = vpop.f32.mrf.mxu0
        %v2364 = vadd.f32 %v2275, %v2363
        %v2365 = vpop.f32.mrf.mxu0
        %v2366 = vadd.f32 %v2277, %v2365
        %2367 = vmatmul.bf16.gmra.mxu0 %v413
        %v2368 = vpop.f32.mrf.mxu0
        %v2369 = vadd.f32 %v2280, %v2368
        %v2370 = vpop.f32.mrf.mxu0
        %v2371 = vadd.f32 %v2282, %v2370
        %2372 = vmatmul.bf16.gmra.mxu0 %v418
        %v2373 = vpop.f32.mrf.mxu0
        %v2374 = vadd.f32 %v2285, %v2373
        %v2375 = vpop.f32.mrf.mxu0
        %v2376 = vadd.f32 %v2287, %v2375
        %2377 = vmatmul.bf16.gmra.mxu0 %v423
        %v2378 = vpop.f32.mrf.mxu0
        %v2379 = vadd.f32 %v2290, %v2378
        %v2380 = vpop.f32.mrf.mxu0
        %v2381 = vadd.f32 %v2292, %v2380
        %2382 = vmatmul.bf16.gmra.mxu0 %v428
        %v2383 = vpop.f32.mrf.mxu0
        %v2384 = vadd.f32 %v2295, %v2383
        %v2385 = vpop.f32.mrf.mxu0
        %v2386 = vadd.f32 %v2297, %v2385
        %2387 = vmatmul.bf16.gmra.mxu0 %v433
        %v2388 = vpop.f32.mrf.mxu0
        %v2389 = vadd.f32 %v2300, %v2388
        %v2390 = vpop.f32.mrf.mxu0
        %v2391 = vadd.f32 %v2302, %v2390
        %2392 = vmatmul.bf16.gmra.mxu0 %v438
        %v2393 = vpop.f32.mrf.mxu0
        %v2394 = vadd.f32 %v2305, %v2393
        %v2395 = vpop.f32.mrf.mxu0
        %v2396 = vadd.f32 %v2307, %v2395
        %2397 = vdwg.mxu0
        %2398 = vmatpush.bf16.msra.mxu0 %v1096
        %2399 = vmatpush.bf16.msra.mxu0 %v1093
        %2400 = vmatpush.bf16.msra.mxu0 %v1090
        %2401 = vmatpush.bf16.msra.mxu0 %v1087
        %2402 = vmatpush.bf16.msra.mxu0 %v1084
        %2403 = vmatpush.bf16.msra.mxu0 %v1081
        %2404 = vmatpush.bf16.msra.mxu0 %v1078
        %2405 = vmatpush.bf16.msra.mxu0 %v1075
        %2406 = vmatmul.bf16.gmra.mxu0 %v364
        %v2407 = vpop.f32.mrf.mxu0
        %v2408 = vadd.f32 %v2319, %v2407
        %v2409 = vpop.f32.mrf.mxu0
        %v2410 = vadd.f32 %v2321, %v2409
        %2411 = vmatmul.bf16.gmra.mxu0 %v369
        %v2412 = vpop.f32.mrf.mxu0
        %v2413 = vadd.f32 %v2324, %v2412
        %v2414 = vpop.f32.mrf.mxu0
        %v2415 = vadd.f32 %v2326, %v2414
        %2416 = vmatmul.bf16.gmra.mxu0 %v374
        %v2417 = vpop.f32.mrf.mxu0
        %v2418 = vadd.f32 %v2329, %v2417
        %v2419 = vpop.f32.mrf.mxu0
        %v2420 = vadd.f32 %v2331, %v2419
        %2421 = vmatmul.bf16.gmra.mxu0 %v379
        %v2422 = vpop.f32.mrf.mxu0
        %v2423 = vadd.f32 %v2334, %v2422
        %v2424 = vpop.f32.mrf.mxu0
        %v2425 = vadd.f32 %v2336, %v2424
        %2426 = vmatmul.bf16.gmra.mxu0 %v384
        %v2427 = vpop.f32.mrf.mxu0
        %v2428 = vadd.f32 %v2339, %v2427
        %v2429 = vpop.f32.mrf.mxu0
        %v2430 = vadd.f32 %v2341, %v2429
        %2431 = vmatmul.bf16.gmra.mxu0 %v389
        %v2432 = vpop.f32.mrf.mxu0
        %v2433 = vadd.f32 %v2344, %v2432
        %v2434 = vpop.f32.mrf.mxu0
        %v2435 = vadd.f32 %v2346, %v2434
        %2436 = vmatmul.bf16.gmra.mxu0 %v394
        %v2437 = vpop.f32.mrf.mxu0
        %v2438 = vadd.f32 %v2349, %v2437
        %v2439 = vpop.f32.mrf.mxu0
        %v2440 = vadd.f32 %v2351, %v2439
        %2441 = vmatmul.bf16.gmra.mxu0 %v399
        %v2442 = vpop.f32.mrf.mxu0
        %v2443 = vadd.f32 %v2354, %v2442
        %v2444 = vpop.f32.mrf.mxu0
        %v2445 = vadd.f32 %v2356, %v2444
        %2446 = vmatmul.bf16.gmra.mxu0 %v404
        %v2447 = vpop.f32.mrf.mxu0
        %v2448 = vadd.f32 %v2359, %v2447
        %v2449 = vpop.f32.mrf.mxu0
        %v2450 = vadd.f32 %v2361, %v2449
        %2451 = vmatmul.bf16.gmra.mxu0 %v409
        %v2452 = vpop.f32.mrf.mxu0
        %v2453 = vadd.f32 %v2364, %v2452
        %v2454 = vpop.f32.mrf.mxu0
        %v2455 = vadd.f32 %v2366, %v2454
        %2456 = vmatmul.bf16.gmra.mxu0 %v414
        %v2457 = vpop.f32.mrf.mxu0
        %v2458 = vadd.f32 %v2369, %v2457
        %v2459 = vpop.f32.mrf.mxu0
        %v2460 = vadd.f32 %v2371, %v2459
        %2461 = vmatmul.bf16.gmra.mxu0 %v419
        %v2462 = vpop.f32.mrf.mxu0
        %v2463 = vadd.f32 %v2374, %v2462
        %v2464 = vpop.f32.mrf.mxu0
        %v2465 = vadd.f32 %v2376, %v2464
        %2466 = vmatmul.bf16.gmra.mxu0 %v424
        %v2467 = vpop.f32.mrf.mxu0
        %v2468 = vadd.f32 %v2379, %v2467
        %v2469 = vpop.f32.mrf.mxu0
        %v2470 = vadd.f32 %v2381, %v2469
        %2471 = vmatmul.bf16.gmra.mxu0 %v429
        %v2472 = vpop.f32.mrf.mxu0
        %v2473 = vadd.f32 %v2384, %v2472
        %v2474 = vpop.f32.mrf.mxu0
        %v2475 = vadd.f32 %v2386, %v2474
        %2476 = vmatmul.bf16.gmra.mxu0 %v434
        %v2477 = vpop.f32.mrf.mxu0
        %v2478 = vadd.f32 %v2389, %v2477
        %v2479 = vpop.f32.mrf.mxu0
        %v2480 = vadd.f32 %v2391, %v2479
        %2481 = vmatmul.bf16.gmra.mxu0 %v439
        %v2482 = vpop.f32.mrf.mxu0
        %v2483 = vadd.f32 %v2394, %v2482
        %v2484 = vpop.f32.mrf.mxu0
        %v2485 = vadd.f32 %v2396, %v2484
        %2486 = vdwg.mxu0
        %2487 = vmatpush.bf16.msra.mxu0 %v1120
        %2488 = vmatpush.bf16.msra.mxu0 %v1117
        %2489 = vmatpush.bf16.msra.mxu0 %v1114
        %2490 = vmatpush.bf16.msra.mxu0 %v1111
        %2491 = vmatpush.bf16.msra.mxu0 %v1108
        %2492 = vmatpush.bf16.msra.mxu0 %v1105
        %2493 = vmatpush.bf16.msra.mxu0 %v1102
        %2494 = vmatpush.bf16.msra.mxu0 %v1099
        %2495 = vmatmul.bf16.gmra.mxu0 %v365
        %v2496 = vpop.f32.mrf.mxu0
        %v2497 = vadd.f32 %v2408, %v2496
        %v2498 = vpop.f32.mrf.mxu0
        %v2499 = vadd.f32 %v2410, %v2498
        %2500 = vmatmul.bf16.gmra.mxu0 %v370
        %v2501 = vpop.f32.mrf.mxu0
        %v2502 = vadd.f32 %v2413, %v2501
        %v2503 = vpop.f32.mrf.mxu0
        %v2504 = vadd.f32 %v2415, %v2503
        %2505 = vmatmul.bf16.gmra.mxu0 %v375
        %v2506 = vpop.f32.mrf.mxu0
        %v2507 = vadd.f32 %v2418, %v2506
        %v2508 = vpop.f32.mrf.mxu0
        %v2509 = vadd.f32 %v2420, %v2508
        %2510 = vmatmul.bf16.gmra.mxu0 %v380
        %v2511 = vpop.f32.mrf.mxu0
        %v2512 = vadd.f32 %v2423, %v2511
        %v2513 = vpop.f32.mrf.mxu0
        %v2514 = vadd.f32 %v2425, %v2513
        %2515 = vmatmul.bf16.gmra.mxu0 %v385
        %v2516 = vpop.f32.mrf.mxu0
        %v2517 = vadd.f32 %v2428, %v2516
        %v2518 = vpop.f32.mrf.mxu0
        %v2519 = vadd.f32 %v2430, %v2518
        %2520 = vmatmul.bf16.gmra.mxu0 %v390
        %v2521 = vpop.f32.mrf.mxu0
        %v2522 = vadd.f32 %v2433, %v2521
        %v2523 = vpop.f32.mrf.mxu0
        %v2524 = vadd.f32 %v2435, %v2523
        %2525 = vmatmul.bf16.gmra.mxu0 %v395
        %v2526 = vpop.f32.mrf.mxu0
        %v2527 = vadd.f32 %v2438, %v2526
        %v2528 = vpop.f32.mrf.mxu0
        %v2529 = vadd.f32 %v2440, %v2528
        %2530 = vmatmul.bf16.gmra.mxu0 %v400
        %v2531 = vpop.f32.mrf.mxu0
        %v2532 = vadd.f32 %v2443, %v2531
        %v2533 = vpop.f32.mrf.mxu0
        %v2534 = vadd.f32 %v2445, %v2533
        %2535 = vmatmul.bf16.gmra.mxu0 %v405
        %v2536 = vpop.f32.mrf.mxu0
        %v2537 = vadd.f32 %v2448, %v2536
        %v2538 = vpop.f32.mrf.mxu0
        %v2539 = vadd.f32 %v2450, %v2538
        %2540 = vmatmul.bf16.gmra.mxu0 %v410
        %v2541 = vpop.f32.mrf.mxu0
        %v2542 = vadd.f32 %v2453, %v2541
        %v2543 = vpop.f32.mrf.mxu0
        %v2544 = vadd.f32 %v2455, %v2543
        %2545 = vmatmul.bf16.gmra.mxu0 %v415
        %v2546 = vpop.f32.mrf.mxu0
        %v2547 = vadd.f32 %v2458, %v2546
        %v2548 = vpop.f32.mrf.mxu0
        %v2549 = vadd.f32 %v2460, %v2548
        %2550 = vmatmul.bf16.gmra.mxu0 %v420
        %v2551 = vpop.f32.mrf.mxu0
        %v2552 = vadd.f32 %v2463, %v2551
        %v2553 = vpop.f32.mrf.mxu0
        %v2554 = vadd.f32 %v2465, %v2553
        %2555 = vmatmul.bf16.gmra.mxu0 %v425
        %v2556 = vpop.f32.mrf.mxu0
        %v2557 = vadd.f32 %v2468, %v2556
        %v2558 = vpop.f32.mrf.mxu0
        %v2559 = vadd.f32 %v2470, %v2558
        %2560 = vmatmul.bf16.gmra.mxu0 %v430
        %v2561 = vpop.f32.mrf.mxu0
        %v2562 = vadd.f32 %v2473, %v2561
        %v2563 = vpop.f32.mrf.mxu0
        %v2564 = vadd.f32 %v2475, %v2563
        %2565 = vmatmul.bf16.gmra.mxu0 %v435
        %v2566 = vpop.f32.mrf.mxu0
        %v2567 = vadd.f32 %v2478, %v2566
        %v2568 = vpop.f32.mrf.mxu0
        %v2569 = vadd.f32 %v2480, %v2568
        %2570 = vmatmul.bf16.gmra.mxu0 %v440
        %v2571 = vpop.f32.mrf.mxu0
        %v2572 = vadd.f32 %v2483, %v2571
        %v2573 = vpop.f32.mrf.mxu0
        %v2574 = vadd.f32 %v2485, %v2573
        %2575 = vdwg.mxu0
        %v2576 = vadd.f32 %v1607, %v1609
        %v2577 = vadd.f32 %v2576, %v1612
        %v2578 = vadd.f32 %v2577, %v1614
        %v2579 = vadd.f32 %v2578, %v1617
        %v2580 = vadd.f32 %v2579, %v1619
        %v2581 = vadd.f32 %v2580, %v1622
        %v2582 = vadd.f32 %v2581, %v1624
        %v2583 = vadd.f32 %v2582, %v1627
        %v2584 = vadd.f32 %v2583, %v1629
        %v2585 = vadd.f32 %v2584, %v1632
        %v2586 = vadd.f32 %v2585, %v1634
        %v2587 = vadd.f32 %v2586, %v1637
        %v2588 = vadd.f32 %v2587, %v1639
        %v2589 = vadd.f32 %v2588, %v1642
        %v2590 = vadd.f32 %v2589, %v1644
        %v2591 = vadd.f32 %v2590, %v1647
        %v2592 = vadd.f32 %v2591, %v1649
        %v2593 = vadd.f32 %v2592, %v1652
        %v2594 = vadd.f32 %v2593, %v1654
        %v2595 = vadd.f32 %v2594, %v1657
        %v2596 = vadd.f32 %v2595, %v1659
        %v2597 = vadd.f32 %v2596, %v1662
        %v2598 = vadd.f32 %v2597, %v1664
        %v2599 = vadd.f32 %v2598, %v1667
        %v2600 = vadd.f32 %v2599, %v1669
        %v2601 = vadd.f32 %v2600, %v1672
        %v2602 = vadd.f32 %v2601, %v1674
        %v2603 = vadd.f32 %v2602, %v1677
        %v2604 = vadd.f32 %v2603, %v1679
        %v2605 = vadd.f32 %v2604, %v1682
        %v2606 = vadd.f32 %v2605, %v1684
        %v2607 = vrot.slane %v2606, 4
        %v2608 = vadd.f32 %v2606, %v2607
        %v2609 = vrot.slane %v2608, 2
        %v2610 = vadd.f32 %v2608, %v2609
        %v2611 = vrot.slane %v2610, 1
        %v2612 = vadd.f32 %v2610, %v2611
        %v2613 = vadd.f32 %v2052, %v2054
        %v2614 = vadd.f32 %v2613, %v2057
        %v2615 = vadd.f32 %v2614, %v2059
        %v2616 = vadd.f32 %v2615, %v2062
        %v2617 = vadd.f32 %v2616, %v2064
        %v2618 = vadd.f32 %v2617, %v2067
        %v2619 = vadd.f32 %v2618, %v2069
        %v2620 = vadd.f32 %v2619, %v2072
        %v2621 = vadd.f32 %v2620, %v2074
        %v2622 = vadd.f32 %v2621, %v2077
        %v2623 = vadd.f32 %v2622, %v2079
        %v2624 = vadd.f32 %v2623, %v2082
        %v2625 = vadd.f32 %v2624, %v2084
        %v2626 = vadd.f32 %v2625, %v2087
        %v2627 = vadd.f32 %v2626, %v2089
        %v2628 = vadd.f32 %v2627, %v2092
        %v2629 = vadd.f32 %v2628, %v2094
        %v2630 = vadd.f32 %v2629, %v2097
        %v2631 = vadd.f32 %v2630, %v2099
        %v2632 = vadd.f32 %v2631, %v2102
        %v2633 = vadd.f32 %v2632, %v2104
        %v2634 = vadd.f32 %v2633, %v2107
        %v2635 = vadd.f32 %v2634, %v2109
        %v2636 = vadd.f32 %v2635, %v2112
        %v2637 = vadd.f32 %v2636, %v2114
        %v2638 = vadd.f32 %v2637, %v2117
        %v2639 = vadd.f32 %v2638, %v2119
        %v2640 = vadd.f32 %v2639, %v2122
        %v2641 = vadd.f32 %v2640, %v2124
        %v2642 = vadd.f32 %v2641, %v2127
        %v2643 = vadd.f32 %v2642, %v2129
        %v2644 = vrot.slane %v2643, 4
        %v2645 = vadd.f32 %v2643, %v2644
        %v2646 = vrot.slane %v2645, 2
        %v2647 = vadd.f32 %v2645, %v2646
        %v2648 = vrot.slane %v2647, 1
        %v2649 = vadd.f32 %v2647, %v2648
        %v2650 = vadd.f32 %v2497, %v2499
        %v2651 = vadd.f32 %v2650, %v2502
        %v2652 = vadd.f32 %v2651, %v2504
        %v2653 = vadd.f32 %v2652, %v2507
        %v2654 = vadd.f32 %v2653, %v2509
        %v2655 = vadd.f32 %v2654, %v2512
        %v2656 = vadd.f32 %v2655, %v2514
        %v2657 = vadd.f32 %v2656, %v2517
        %v2658 = vadd.f32 %v2657, %v2519
        %v2659 = vadd.f32 %v2658, %v2522
        %v2660 = vadd.f32 %v2659, %v2524
        %v2661 = vadd.f32 %v2660, %v2527
        %v2662 = vadd.f32 %v2661, %v2529
        %v2663 = vadd.f32 %v2662, %v2532
        %v2664 = vadd.f32 %v2663, %v2534
        %v2665 = vadd.f32 %v2664, %v2537
        %v2666 = vadd.f32 %v2665, %v2539
        %v2667 = vadd.f32 %v2666, %v2542
        %v2668 = vadd.f32 %v2667, %v2544
        %v2669 = vadd.f32 %v2668, %v2547
        %v2670 = vadd.f32 %v2669, %v2549
        %v2671 = vadd.f32 %v2670, %v2552
        %v2672 = vadd.f32 %v2671, %v2554
        %v2673 = vadd.f32 %v2672, %v2557
        %v2674 = vadd.f32 %v2673, %v2559
        %v2675 = vadd.f32 %v2674, %v2562
        %v2676 = vadd.f32 %v2675, %v2564
        %v2677 = vadd.f32 %v2676, %v2567
        %v2678 = vadd.f32 %v2677, %v2569
        %v2679 = vadd.f32 %v2678, %v2572
        %v2680 = vadd.f32 %v2679, %v2574
        %v2681 = vrot.slane %v2680, 4
        %v2682 = vadd.f32 %v2680, %v2681
        %v2683 = vrot.slane %v2682, 2
        %v2684 = vadd.f32 %v2682, %v2683
        %v2685 = vrot.slane %v2684, 1
        %v2686 = vadd.f32 %v2684, %v2685
        %v2690 = vrot.slane %v2649, 7
        %v2691 = vrot.slane %v2686, 6
        %vm2692 = vcmask 1040384
        %v2693 = vsel %vm2692, %v2612, %v2690
        %vm2694 = vcmask 1041408
        %v2695 = vsel %vm2694, %v2693, %v2691
        %v2697 = vlaneseq
        %vm2698 = vcmp.ge.s32.totalorder %v2697, 0
        %vm2699 = vcmp.lt.s32.totalorder %v2697, 384
        %vm2700 = vmand %vm2698, %vm2699
        %2701 = vst.msk [vmem:[%s199] sm:$0x7] %vm2700, %v2695
        %s2702 = sand.u32 %s91, 1
        %s2703 = scalar_lea.sflag [#allocation4], %s2702
        %s2704 = sand.u32 %s91, 1
        %s2705 = smul.addr %s2704, 3
        %s2706 = scalar_lea.vmem [#allocation7], %s2705
        // Predicated region
        $region37: #{tpu_custom_call.1} parent=27 // pred_check
          %p2707 = pneg %p101
        $region38: #{tpu_custom_call.1} parent=27 // pred_check_branch
          %2709 = sbr.rel (%p2707) target = $region40
        $region39: #{tpu_custom_call.1} parent=27 // pred_region
          %2711 = vsyncadd %s2703, 0
          %s2712 = smul.addr %s25, 3
          %s2713 = smul.addr %s24, 3
          %s2714 = sadd.s32 %s2712, %s2713
          %s2715 = scalar_lea.hbm %s2, %s2714
          %s2717 = sshll.u32 %s2706, 4
          %s2718 = int_to_ptr.vmem [resolvable:$true] %s2717
          %s2719 = sshll.u32 %s2715, 4
          %s2720 = int_to_ptr.hbm [resolvable:$true] %s2719
          %2722 = dma.vmem_to_hbm [thread:$0]  %s2718, 48, %s2720, %s2703
        $region40: #{tpu_custom_call.1} parent=27 // pred_fallthru
          _
      $region28: #{tpu_custom_call.1} parent=5 // pred_fallthru
        _
      %p2723 = scmp.le.s32.totalorder 2, %s15
      // Predicated region
      $region41: #{tpu_custom_call.1} parent=5 // pred_check
        %p2724 = pneg %p2723
      $region42: #{tpu_custom_call.1} parent=5 // pred_check_branch
        %2726 = sbr.rel (%p2724) target = $region44
      $region43: #{tpu_custom_call.1} parent=5 // pred_region
        %s2727 = ssub.s32 %s15, 2
        // Predicated region
        $region45: #{tpu_custom_call.1} parent=43 // pred_check
          %p2728 = pneg %p107
        $region46: #{tpu_custom_call.1} parent=43 // pred_check_branch
          %2730 = sbr.rel (%p2728) target = $region48
        $region47: #{tpu_custom_call.1} parent=43 // pred_region
          %s2731 = sand.u32 %s92, 1
          %s2732 = scalar_lea.sflag [#allocation4], %s2731
          %s2733 = sand.u32 %s92, 1
          %s2734 = smul.addr %s2733, 3
          %s2735 = scalar_lea.vmem [#allocation7], %s2734
          %2737 = dma.done %s2732, 48
        $region48: #{tpu_custom_call.1} parent=43 // pred_fallthru
          _
      $region44: #{tpu_custom_call.1} parent=5 // pred_fallthru
        _
    $region6: #{tpu_custom_call.1} parent=1 // loop_footer
      %s19 = sadd.s32 1, %s15
    $region7: #{tpu_custom_call.1} parent=1 // loop_footer_branch
      %14 = sbr.rel target = $region3
    $region8: #{tpu_custom_call.1} parent=1 // loop_exit
      _
    %2738 = vsyncpa [#allocation3], 1
    %s2739 = scalar_lea.sflag [#allocation3], 1
    %2740 = vsyncpa %s2739, 1
    %2741 = vsyncpa [#allocation6], 1
    %2742 = vsyncpa [#allocation4], 1
    %s2743 = scalar_lea.sflag [#allocation4], 1
    %2744 = vsyncpa %s2743, 1

</llo_original>
